<compile_context>
chip_gen: v7x
topology: tpu7x:2x2x1
jax: 0.10.0
libtpu: 0.0.40
codegen_flags: <defaults>
</compile_context>

<pallas_src>
import jax
import jax.numpy as jnp
import numpy as np
from jax import lax
from jax.experimental import pallas as pl
from jax.experimental.pallas import tpu as pltpu

N_PIECES = 7
EMB_DIM = 5
C1_OUT, C1_K = 4, 4
C2_OUT, C2_K = 16, 2
H_IN, W_IN = 22, 10                          # conv1 -> (19,7), pool -> (9,3), conv2 -> (8,2)
H1, W1 = H_IN - C1_K + 1, W_IN - C1_K + 1    # 19, 7
HP, WP = H1 // 2, W1 // 2                    # 9, 3
H2, W2 = HP - C2_K + 1, WP - C2_K + 1        # 8, 2
FLAT = C2_OUT * H2 * W2                      # 256
FC1_IN = FLAT + EMB_DIM                      # 261
FC1_DIM, FC2_DIM, OUT_DIM = 130, 65, 48

BOARD_FLAT = H_IN * W_IN                     # 220 valid board features
BOARD_PAD = 256                              # board lanes padded to 2x128 (native MXU K)
POOL_VALID = C1_OUT * HP * WP                # 108 valid pooled features
POOL_PAD = 128                               # pooled features, padded to one lane tile
FC1_PAD, FC2_PAD, OUT_PAD = 256, 128, 128    # fc dims padded to 128-lane multiples
EMB_PAD = 8                                  # one-hot width (7 -> 8)

MAX_BN = 512                                 # batch-tile cap (VMEM << limit at this size)


# ------------------------------ fused kernel --------------------------------

def cnn_fused_kernel(board_ref, onehot_ref, w1big_ref, b1c_ref, w2big_ref, b2c_ref,
                     w1b_ref, w1e_ref, b1_ref, w2_ref, b2_ref, w3_ref, b3_ref,
                     out_ref):
    f32, bf16 = jnp.float32, jnp.bfloat16

    # conv1 folded to a (256 -> 4*128) matmul; the 4 lane-tile-aligned column
    # groups are the 2x2 maxpool window candidates, each in (co, py, px) order.
    # Board arrives as bf16 already (cast once in the wrapper).
    z1 = jnp.dot(board_ref[...], w1big_ref[...],
                 preferred_element_type=f32)                              # (bn, 512)
    m = jnp.maximum(
        jnp.maximum(z1[:, 0 * POOL_PAD:1 * POOL_PAD], z1[:, 1 * POOL_PAD:2 * POOL_PAD]),
        jnp.maximum(z1[:, 2 * POOL_PAD:3 * POOL_PAD], z1[:, 3 * POOL_PAD:4 * POOL_PAD]))
    pooled = jnp.maximum(m + b1c_ref[...], 0.0)                           # (bn, 128)

    # conv2 folded to a (128 -> 256) matmul; output columns are already in
    # torch.flatten (channel, h, w) order, so no transpose before fc1.
    z2 = jnp.dot(pooled.astype(bf16), w2big_ref[...], preferred_element_type=f32)
    feat = jnp.maximum(z2 + b2c_ref[...], 0.0)                            # (bn, 256)

    # fc1 / fc2 / fc3 on zero-padded, 128-lane-aligned weights.  The embedding
    # lookup arrives as a precomputed one-hot (bn, 8) bf16 block; the embedding
    # table is already folded into w1e at init time.
    h = jnp.dot(feat.astype(bf16), w1b_ref[...], preferred_element_type=f32)
    h = h + jnp.dot(onehot_ref[...], w1e_ref[...], preferred_element_type=f32)
    h = jnp.maximum(h + b1_ref[...], 0.0)                                 # (bn, 256)
    h = jnp.dot(h.astype(bf16), w2_ref[...], preferred_element_type=f32)
    h = jnp.maximum(h + b2_ref[...], 0.0)                                 # (bn, 128)
    out_ref[...] = (jnp.dot(h.astype(bf16), w3_ref[...],
                            preferred_element_type=f32)
                    + b3_ref[...]).astype(out_ref.dtype)                  # (bn, 128) bf16


# ------------------------ one-time parameter folding -------------------------

def prepare_params(p):
    """Fold conv1+pool, conv2+flatten, the embedding lookup and the fc padding
    into lane-dense matmul operands.  Runs eagerly once, outside the hot path."""
    f32, bf16 = jnp.float32, jnp.bfloat16
    dn = ("NCHW", "OIHW", "NCHW")
    hi = lax.Precision.HIGHEST

    # conv1 + 2x2-maxpool candidate extraction as one (256 -> 4*128) matrix,
    # built by probing the (linear, bias-free) conv with an identity batch.
    # Rows 220..255 are zero (board lane padding contributes nothing).
    eye = jnp.eye(BOARD_FLAT, dtype=f32).reshape(BOARD_FLAT, 1, H_IN, W_IN)
    c1 = lax.conv_general_dilated(eye, p["conv1_w"], (1, 1), "VALID",
                                  dimension_numbers=dn, precision=hi)     # (220,4,19,7)
    w1big = jnp.zeros((BOARD_PAD, 4 * POOL_PAD), f32)
    for cand in range(4):
        dy, dx = divmod(cand, 2)
        sub = c1[:, :, dy:dy + 2 * HP:2, dx:dx + 2 * WP:2]                # (220,4,9,3)
        w1big = w1big.at[:BOARD_FLAT,
                         cand * POOL_PAD:cand * POOL_PAD + POOL_VALID].set(
            sub.reshape(BOARD_FLAT, POOL_VALID))
    b1c = jnp.zeros((1, POOL_PAD), f32).at[0, :POOL_VALID].set(
        jnp.repeat(p["conv1_b"], HP * WP))

    # conv2 as a (128 -> 256) matrix whose output columns are in torch.flatten
    # (channel, h, w) order.
    eye2 = jnp.eye(POOL_VALID, dtype=f32).reshape(POOL_VALID, C1_OUT, HP, WP)
    c2 = lax.conv_general_dilated(eye2, p["conv2_w"], (1, 1), "VALID",
                                  dimension_numbers=dn, precision=hi)     # (108,16,8,2)
    w2big = jnp.zeros((POOL_PAD, FLAT), f32).at[:POOL_VALID, :].set(
        c2.reshape(POOL_VALID, FLAT))
    b2c = jnp.repeat(p["conv2_b"], H2 * W2).reshape(1, FLAT)

    # fc1 split into board part and embedding part (embedding table folded in).
    w1b = jnp.zeros((FLAT, FC1_PAD), f32).at[:, :FC1_DIM].set(p["fc1_w"][:, :FLAT].T)
    e1 = jnp.dot(p["emb"], p["fc1_w"][:, FLAT:].T, precision=hi)          # (7, 130)
    w1e = jnp.zeros((EMB_PAD, FC1_PAD), f32).at[:N_PIECES, :FC1_DIM].set(e1)
    b1 = jnp.zeros((1, FC1_PAD), f32).at[0, :FC1_DIM].set(p["fc1_b"])
    w2 = jnp.zeros((FC1_PAD, FC2_PAD), f32).at[:FC1_DIM, :FC2_DIM].set(p["fc2_w"].T)
    b2 = jnp.zeros((1, FC2_PAD), f32).at[0, :FC2_DIM].set(p["fc2_b"])
    w3 = jnp.zeros((FC2_PAD, OUT_PAD), f32).at[:FC2_DIM, :OUT_DIM].set(p["fc3_w"].T)
    b3 = jnp.zeros((1, OUT_PAD), f32).at[0, :OUT_DIM].set(p["fc3_b"])

    return {
        "w1big": w1big.astype(bf16), "b1c": b1c,
        "w2big": w2big.astype(bf16), "b2c": b2c,
        "w1b": w1b.astype(bf16), "w1e": w1e.astype(bf16), "b1": b1,
        "w2": w2.astype(bf16), "b2": b2,
        "w3": w3.astype(bf16), "b3": b3,
    }


# --------------------------------- forward ----------------------------------

def _round_up(a, m):
    return ((a + m - 1) // m) * m


@jax.jit
def cnn_forward(board, piece, prep):
    n = board.shape[0]

    # Batch-tile selection (trace-time, Python ints):
    #  * multiple of 16 (bf16 packs 16 sublanes per vreg),
    #  * capped at MAX_BN so per-block VMEM stays tiny on every generation,
    #  * >= 2 grid steps whenever the batch allows it, so the "parallel" batch
    #    axis can shard across both TensorCores on v7x.
    n16 = _round_up(n, 16)
    if n16 <= 16:
        bn = n16
    else:
        bn = min(MAX_BN, _round_up((n16 + 1) // 2, 16))
    n_pad = _round_up(n, bn)

    # Board: flatten (contiguous reshape), cast to bf16 once, pad batch rows and
    # lanes (220 -> 256) with zeros.  Piece: precompute one-hot(piece-1) in bf16.
    # TODO(synk): for very large batches, fuse the cast/pad into the pallas_call
    # inputs (allow_input_fusion) to avoid the extra HBM copy before the kernel.
    x = board.reshape(n, BOARD_FLAT).astype(jnp.bfloat16)
    x = jnp.pad(x, ((0, n_pad - n), (0, BOARD_PAD - BOARD_FLAT)))
    idx = piece.reshape(n, 1).astype(jnp.int32) - 1
    onehot = (idx == lax.broadcasted_iota(jnp.int32, (n, EMB_PAD), 1)).astype(jnp.bfloat16)
    onehot = jnp.pad(onehot, ((0, n_pad - n), (0, 0)))

    batched = lambda i: (i, 0)
    const = lambda i: (0, 0)      # weights stay VMEM-resident across grid steps

    out = pl.pallas_call(
        cnn_fused_kernel,
        out_shape=jax.ShapeDtypeStruct((n_pad, OUT_PAD), jnp.bfloat16),
        grid=(n_pad // bn,),
        in_specs=[
            pl.BlockSpec((bn, BOARD_PAD), batched),           # board (bf16, lane-dense)
            pl.BlockSpec((bn, EMB_PAD), batched),             # one-hot piece (bf16)
            pl.BlockSpec((BOARD_PAD, 4 * POOL_PAD), const),   # conv1+pool fold
            pl.BlockSpec((1, POOL_PAD), const),               # conv1 bias row
            pl.BlockSpec((POOL_PAD, FLAT), const),            # conv2 fold
            pl.BlockSpec((1, FLAT), const),                   # conv2 bias row
            pl.BlockSpec((FLAT, FC1_PAD), const),             # fc1 (board part)
            pl.BlockSpec((EMB_PAD, FC1_PAD), const),          # fc1 (embedding part)
            pl.BlockSpec((1, FC1_PAD), const),                # fc1 bias
            pl.BlockSpec((FC1_PAD, FC2_PAD), const),          # fc2
            pl.BlockSpec((1, FC2_PAD), const),                # fc2 bias
            pl.BlockSpec((FC2_PAD, OUT_PAD), const),          # fc3
            pl.BlockSpec((1, OUT_PAD), const),                # fc3 bias
        ],
        out_specs=pl.BlockSpec((bn, OUT_PAD), batched),
        compiler_params=pltpu.CompilerParams(
            dimension_semantics=("parallel",),
            vmem_limit_bytes=32 * 1024 * 1024,   # safe on v5e/v6e (128 MiB) and v7x (64 MiB)
        ),
    )(x, onehot, prep["w1big"], prep["b1c"], prep["w2big"], prep["b2c"],
      prep["w1b"], prep["w1e"], prep["b1"], prep["w2"], prep["b2"],
      prep["w3"], prep["b3"])
    return out[:n, :OUT_DIM].astype(jnp.float32)


# ------------------------- deterministic parameters --------------------------

def init_params(key):
    ks = jax.random.split(key, 11)
    f = jnp.float32
    return {
        "conv1_w": 0.1 * jax.random.normal(ks[0], (C1_OUT, 1, C1_K, C1_K), f),
        "conv1_b": 0.1 * jax.random.normal(ks[1], (C1_OUT,), f),
        "conv2_w": 0.1 * jax.random.normal(ks[2], (C2_OUT, C1_OUT, C2_K, C2_K), f),
        "conv2_b": 0.1 * jax.random.normal(ks[3], (C2_OUT,), f),
        "emb":     0.1 * jax.random.normal(ks[4], (N_PIECES, EMB_DIM), f),
        "fc1_w":   0.1 * jax.random.normal(ks[5], (FC1_DIM, FC1_IN), f),
        "fc1_b":   0.1 * jax.random.normal(ks[6], (FC1_DIM,), f),
        "fc2_w":   0.1 * jax.random.normal(ks[7], (FC2_DIM, FC1_DIM), f),
        "fc2_b":   0.1 * jax.random.normal(ks[8], (FC2_DIM,), f),
        "fc3_w":   0.1 * jax.random.normal(ks[9], (OUT_DIM, FC2_DIM), f),
        "fc3_b":   0.1 * jax.random.normal(ks[10], (OUT_DIM,), f),
    }


# ------------------------------ pure-JAX reference ---------------------------

def reference(board, piece, p):
    n = board.shape[0]
    dn = ("NCHW", "OIHW", "NCHW")
    hi = lax.Precision.HIGHEST
    y = lax.conv_general_dilated(board, p["conv1_w"], (1, 1), "VALID",
                                 dimension_numbers=dn, precision=hi)
    y = jnp.maximum(y + p["conv1_b"][None, :, None, None], 0.0)
    y = lax.reduce_window(y, -jnp.inf, lax.max, (1, 1, 2, 2), (1, 1, 2, 2), "VALID")
    y = lax.conv_general_dilated(y, p["conv2_w"], (1, 1), "VALID",
                                 dimension_numbers=dn, precision=hi)
    y = jnp.maximum(y + p["conv2_b"][None, :, None, None], 0.0)
    flat = y.reshape(n, -1)
    emb = p["emb"][piece.reshape(-1).astype(jnp.int32) - 1].reshape(n, -1)
    comb = jnp.concatenate([flat, emb], axis=1)
    h = jnp.maximum(jnp.dot(comb, p["fc1_w"].T, precision=hi) + p["fc1_b"], 0.0)
    h = jnp.maximum(jnp.dot(h, p["fc2_w"].T, precision=hi) + p["fc2_b"], 0.0)
    return jnp.dot(h, p["fc3_w"].T, precision=hi) + p["fc3_b"]


if __name__ == "__main__":
    key = jax.random.PRNGKey(0)
    pkey, bkey, ikey = jax.random.split(key, 3)
    params = init_params(pkey)
    prep = prepare_params(params)

    N = 2
    board = jax.random.normal(bkey, (N, 1, H_IN, W_IN), jnp.float32)
    piece = jax.random.randint(ikey, (N, 1), 1, N_PIECES + 1, dtype=jnp.int32)

    out = cnn_forward(board, piece, prep)
    out = jax.block_until_ready(out)

    ref = reference(board, piece, params)
    np.testing.assert_allclose(np.asarray(out), np.asarray(ref), rtol=1e-2, atol=1e-2)

    print("KERNEL_OK")
</pallas_src>

<mosaic_0001>
module attributes {stable_mosaic.version = 11 : i64} {
  func.func @cnn_fused_kernel(%arg0: i32, %arg1: memref<16x256xbf16, #tpu.memory_space<vmem>>, %arg2: memref<16x8xbf16, #tpu.memory_space<vmem>>, %arg3: memref<256x512xbf16, #tpu.memory_space<vmem>>, %arg4: memref<1x128xf32, #tpu.memory_space<vmem>>, %arg5: memref<128x256xbf16, #tpu.memory_space<vmem>>, %arg6: memref<1x256xf32, #tpu.memory_space<vmem>>, %arg7: memref<256x256xbf16, #tpu.memory_space<vmem>>, %arg8: memref<8x256xbf16, #tpu.memory_space<vmem>>, %arg9: memref<1x256xf32, #tpu.memory_space<vmem>>, %arg10: memref<256x128xbf16, #tpu.memory_space<vmem>>, %arg11: memref<1x128xf32, #tpu.memory_space<vmem>>, %arg12: memref<128x128xbf16, #tpu.memory_space<vmem>>, %arg13: memref<1x128xf32, #tpu.memory_space<vmem>>, %arg14: memref<16x128xbf16, #tpu.memory_space<vmem>>) attributes {dimension_semantics = [#tpu.dimension_semantics<parallel>], iteration_bounds = array<i64: 1>, scalar_prefetch = 0 : i64, scratch_operands = 0 : i64, tpu.core_type = #tpu.core_type<tc>, window_params = [{transform_indices = @transform_0, window_bounds = array<i64: 16, 256>}, {transform_indices = @transform_1, window_bounds = array<i64: 16, 8>}, {pipeline_mode = #tpu.pipeline_mode<synchronous>, transform_indices = @transform_2, window_bounds = array<i64: 256, 512>}, {pipeline_mode = #tpu.pipeline_mode<synchronous>, transform_indices = @transform_3, window_bounds = array<i64: 1, 128>}, {pipeline_mode = #tpu.pipeline_mode<synchronous>, transform_indices = @transform_4, window_bounds = array<i64: 128, 256>}, {pipeline_mode = #tpu.pipeline_mode<synchronous>, transform_indices = @transform_5, window_bounds = array<i64: 1, 256>}, {pipeline_mode = #tpu.pipeline_mode<synchronous>, transform_indices = @transform_6, window_bounds = array<i64: 256, 256>}, {pipeline_mode = #tpu.pipeline_mode<synchronous>, transform_indices = @transform_7, window_bounds = array<i64: 8, 256>}, {pipeline_mode = #tpu.pipeline_mode<synchronous>, transform_indices = @transform_8, window_bounds = array<i64: 1, 256>}, {pipeline_mode = #tpu.pipeline_mode<synchronous>, transform_indices = @transform_9, window_bounds = array<i64: 256, 128>}, {pipeline_mode = #tpu.pipeline_mode<synchronous>, transform_indices = @transform_10, window_bounds = array<i64: 1, 128>}, {pipeline_mode = #tpu.pipeline_mode<synchronous>, transform_indices = @transform_11, window_bounds = array<i64: 128, 128>}, {pipeline_mode = #tpu.pipeline_mode<synchronous>, transform_indices = @transform_12, window_bounds = array<i64: 1, 128>}, {transform_indices = @transform_13, window_bounds = array<i64: 16, 128>}]} {
    %c0 = arith.constant 0 : index
    %c0_0 = arith.constant 0 : index
    %0 = vector.load %arg1[%c0, %c0_0] : memref<16x256xbf16, #tpu.memory_space<vmem>>, vector<16x256xbf16>
    %c0_1 = arith.constant 0 : index
    %c0_2 = arith.constant 0 : index
    %1 = vector.load %arg3[%c0_1, %c0_2] : memref<256x512xbf16, #tpu.memory_space<vmem>>, vector<256x512xbf16>
    %cst = arith.constant dense<0.000000e+00> : vector<16x512xf32>
    %2 = tpu.matmul %0, %1, %cst {dimension_numbers = #tpu.dot_dimension_numbers<[1], [0], [0], [1], [0, 0, 1, 1], [], []>} : vector<16x256xbf16>, vector<256x512xbf16>, vector<16x512xf32> -> vector<16x512xf32>
    %3 = vector.extract_strided_slice %2 {offsets = [0, 0], sizes = [16, 128], strides = [1, 1]} : vector<16x512xf32> to vector<16x128xf32>
    %4 = vector.extract_strided_slice %2 {offsets = [0, 128], sizes = [16, 128], strides = [1, 1]} : vector<16x512xf32> to vector<16x128xf32>
    %5 = arith.maximumf %3, %4 : vector<16x128xf32>
    %6 = vector.extract_strided_slice %2 {offsets = [0, 256], sizes = [16, 128], strides = [1, 1]} : vector<16x512xf32> to vector<16x128xf32>
    %7 = vector.extract_strided_slice %2 {offsets = [0, 384], sizes = [16, 128], strides = [1, 1]} : vector<16x512xf32> to vector<16x128xf32>
    %8 = arith.maximumf %6, %7 : vector<16x128xf32>
    %9 = arith.maximumf %5, %8 : vector<16x128xf32>
    %c0_3 = arith.constant 0 : index
    %c0_4 = arith.constant 0 : index
    %10 = vector.load %arg4[%c0_3, %c0_4] : memref<1x128xf32, #tpu.memory_space<vmem>>, vector<1x128xf32>
    %11 = vector.broadcast %10 : vector<1x128xf32> to vector<16x128xf32>
    %12 = arith.addf %9, %11 : vector<16x128xf32>
    %cst_5 = arith.constant 0.000000e+00 : f32
    %13 = vector.broadcast %cst_5 : f32 to vector<16x128xf32>
    %14 = arith.maximumf %12, %13 : vector<16x128xf32>
    %15 = arith.truncf %14 : vector<16x128xf32> to vector<16x128xbf16>
    %c0_6 = arith.constant 0 : index
    %c0_7 = arith.constant 0 : index
    %16 = vector.load %arg5[%c0_6, %c0_7] : memref<128x256xbf16, #tpu.memory_space<vmem>>, vector<128x256xbf16>
    %cst_8 = arith.constant dense<0.000000e+00> : vector<16x256xf32>
    %17 = tpu.matmul %15, %16, %cst_8 {dimension_numbers = #tpu.dot_dimension_numbers<[1], [0], [0], [1], [0, 0, 1, 1], [], []>} : vector<16x128xbf16>, vector<128x256xbf16>, vector<16x256xf32> -> vector<16x256xf32>
    %c0_9 = arith.constant 0 : index
    %c0_10 = arith.constant 0 : index
    %18 = vector.load %arg6[%c0_9, %c0_10] : memref<1x256xf32, #tpu.memory_space<vmem>>, vector<1x256xf32>
    %19 = vector.broadcast %18 : vector<1x256xf32> to vector<16x256xf32>
    %20 = arith.addf %17, %19 : vector<16x256xf32>
    %cst_11 = arith.constant 0.000000e+00 : f32
    %21 = vector.broadcast %cst_11 : f32 to vector<16x256xf32>
    %22 = arith.maximumf %20, %21 : vector<16x256xf32>
    %23 = arith.truncf %22 : vector<16x256xf32> to vector<16x256xbf16>
    %c0_12 = arith.constant 0 : index
    %c0_13 = arith.constant 0 : index
    %24 = vector.load %arg7[%c0_12, %c0_13] : memref<256x256xbf16, #tpu.memory_space<vmem>>, vector<256x256xbf16>
    %cst_14 = arith.constant dense<0.000000e+00> : vector<16x256xf32>
    %25 = tpu.matmul %23, %24, %cst_14 {dimension_numbers = #tpu.dot_dimension_numbers<[1], [0], [0], [1], [0, 0, 1, 1], [], []>} : vector<16x256xbf16>, vector<256x256xbf16>, vector<16x256xf32> -> vector<16x256xf32>
    %c0_15 = arith.constant 0 : index
    %c0_16 = arith.constant 0 : index
    %26 = vector.load %arg2[%c0_15, %c0_16] : memref<16x8xbf16, #tpu.memory_space<vmem>>, vector<16x8xbf16>
    %c0_17 = arith.constant 0 : index
    %c0_18 = arith.constant 0 : index
    %27 = vector.load %arg8[%c0_17, %c0_18] : memref<8x256xbf16, #tpu.memory_space<vmem>>, vector<8x256xbf16>
    %cst_19 = arith.constant dense<0.000000e+00> : vector<16x256xf32>
    %28 = tpu.matmul %26, %27, %cst_19 {dimension_numbers = #tpu.dot_dimension_numbers<[1], [0], [0], [1], [0, 0, 1, 1], [], []>} : vector<16x8xbf16>, vector<8x256xbf16>, vector<16x256xf32> -> vector<16x256xf32>
    %29 = arith.addf %25, %28 : vector<16x256xf32>
    %c0_20 = arith.constant 0 : index
    %c0_21 = arith.constant 0 : index
    %30 = vector.load %arg9[%c0_20, %c0_21] : memref<1x256xf32, #tpu.memory_space<vmem>>, vector<1x256xf32>
    %31 = vector.broadcast %30 : vector<1x256xf32> to vector<16x256xf32>
    %32 = arith.addf %29, %31 : vector<16x256xf32>
    %cst_22 = arith.constant 0.000000e+00 : f32
    %33 = vector.broadcast %cst_22 : f32 to vector<16x256xf32>
    %34 = arith.maximumf %32, %33 : vector<16x256xf32>
    %35 = arith.truncf %34 : vector<16x256xf32> to vector<16x256xbf16>
    %c0_23 = arith.constant 0 : index
    %c0_24 = arith.constant 0 : index
    %36 = vector.load %arg10[%c0_23, %c0_24] : memref<256x128xbf16, #tpu.memory_space<vmem>>, vector<256x128xbf16>
    %cst_25 = arith.constant dense<0.000000e+00> : vector<16x128xf32>
    %37 = tpu.matmul %35, %36, %cst_25 {dimension_numbers = #tpu.dot_dimension_numbers<[1], [0], [0], [1], [0, 0, 1, 1], [], []>} : vector<16x256xbf16>, vector<256x128xbf16>, vector<16x128xf32> -> vector<16x128xf32>
    %c0_26 = arith.constant 0 : index
    %c0_27 = arith.constant 0 : index
    %38 = vector.load %arg11[%c0_26, %c0_27] : memref<1x128xf32, #tpu.memory_space<vmem>>, vector<1x128xf32>
    %39 = vector.broadcast %38 : vector<1x128xf32> to vector<16x128xf32>
    %40 = arith.addf %37, %39 : vector<16x128xf32>
    %cst_28 = arith.constant 0.000000e+00 : f32
    %41 = vector.broadcast %cst_28 : f32 to vector<16x128xf32>
    %42 = arith.maximumf %40, %41 : vector<16x128xf32>
    %43 = arith.truncf %42 : vector<16x128xf32> to vector<16x128xbf16>
    %c0_29 = arith.constant 0 : index
    %c0_30 = arith.constant 0 : index
    %44 = vector.load %arg12[%c0_29, %c0_30] : memref<128x128xbf16, #tpu.memory_space<vmem>>, vector<128x128xbf16>
    %cst_31 = arith.constant dense<0.000000e+00> : vector<16x128xf32>
    %45 = tpu.matmul %43, %44, %cst_31 {dimension_numbers = #tpu.dot_dimension_numbers<[1], [0], [0], [1], [0, 0, 1, 1], [], []>} : vector<16x128xbf16>, vector<128x128xbf16>, vector<16x128xf32> -> vector<16x128xf32>
    %c0_32 = arith.constant 0 : index
    %c0_33 = arith.constant 0 : index
    %46 = vector.load %arg13[%c0_32, %c0_33] : memref<1x128xf32, #tpu.memory_space<vmem>>, vector<1x128xf32>
    %47 = vector.broadcast %46 : vector<1x128xf32> to vector<16x128xf32>
    %48 = arith.addf %45, %47 : vector<16x128xf32>
    %49 = arith.truncf %48 : vector<16x128xf32> to vector<16x128xbf16>
    %c0_34 = arith.constant 0 : index
    %c0_35 = arith.constant 0 : index
    %50 = vector.load %arg14[%c0_34, %c0_35] : memref<16x128xbf16, #tpu.memory_space<vmem>>, vector<16x128xbf16>
    tpu.vector_store %arg14[%c0_34, %c0_35], %49 {strides = array<i32>} : memref<16x128xbf16, #tpu.memory_space<vmem>>, vector<16x128xbf16>,
    return
  }
  func.func @transform_0(%arg0: i32) -> (i32, i32) {
    %c0_i32 = arith.constant 0 : i32
    %c0_i32_0 = arith.constant 0 : i32
    return %arg0, %c0_i32 : i32, i32
  }
  func.func @transform_1(%arg0: i32) -> (i32, i32) {
    %c0_i32 = arith.constant 0 : i32
    %c0_i32_0 = arith.constant 0 : i32
    return %arg0, %c0_i32 : i32, i32
  }
  func.func @transform_2(%arg0: i32) -> (i32, i32) {
    %c0_i32 = arith.constant 0 : i32
    %c0_i32_0 = arith.constant 0 : i32
    %c0_i32_1 = arith.constant 0 : i32
    return %c0_i32, %c0_i32_0 : i32, i32
  }
  func.func @transform_3(%arg0: i32) -> (i32, i32) {
    %c0_i32 = arith.constant 0 : i32
    %c0_i32_0 = arith.constant 0 : i32
    %c0_i32_1 = arith.constant 0 : i32
    return %c0_i32, %c0_i32_0 : i32, i32
  }
  func.func @transform_4(%arg0: i32) -> (i32, i32) {
    %c0_i32 = arith.constant 0 : i32
    %c0_i32_0 = arith.constant 0 : i32
    %c0_i32_1 = arith.constant 0 : i32
    return %c0_i32, %c0_i32_0 : i32, i32
  }
  func.func @transform_5(%arg0: i32) -> (i32, i32) {
    %c0_i32 = arith.constant 0 : i32
    %c0_i32_0 = arith.constant 0 : i32
    %c0_i32_1 = arith.constant 0 : i32
    return %c0_i32, %c0_i32_0 : i32, i32
  }
  func.func @transform_6(%arg0: i32) -> (i32, i32) {
    %c0_i32 = arith.constant 0 : i32
    %c0_i32_0 = arith.constant 0 : i32
    %c0_i32_1 = arith.constant 0 : i32
    return %c0_i32, %c0_i32_0 : i32, i32
  }
  func.func @transform_7(%arg0: i32) -> (i32, i32) {
    %c0_i32 = arith.constant 0 : i32
    %c0_i32_0 = arith.constant 0 : i32
    %c0_i32_1 = arith.constant 0 : i32
    return %c0_i32, %c0_i32_0 : i32, i32
  }
  func.func @transform_8(%arg0: i32) -> (i32, i32) {
    %c0_i32 = arith.constant 0 : i32
    %c0_i32_0 = arith.constant 0 : i32
    %c0_i32_1 = arith.constant 0 : i32
    return %c0_i32, %c0_i32_0 : i32, i32
  }
  func.func @transform_9(%arg0: i32) -> (i32, i32) {
    %c0_i32 = arith.constant 0 : i32
    %c0_i32_0 = arith.constant 0 : i32
    %c0_i32_1 = arith.constant 0 : i32
    return %c0_i32, %c0_i32_0 : i32, i32
  }
  func.func @transform_10(%arg0: i32) -> (i32, i32) {
    %c0_i32 = arith.constant 0 : i32
    %c0_i32_0 = arith.constant 0 : i32
    %c0_i32_1 = arith.constant 0 : i32
    return %c0_i32, %c0_i32_0 : i32, i32
  }
  func.func @transform_11(%arg0: i32) -> (i32, i32) {
    %c0_i32 = arith.constant 0 : i32
    %c0_i32_0 = arith.constant 0 : i32
    %c0_i32_1 = arith.constant 0 : i32
    return %c0_i32, %c0_i32_0 : i32, i32
  }
  func.func @transform_12(%arg0: i32) -> (i32, i32) {
    %c0_i32 = arith.constant 0 : i32
    %c0_i32_0 = arith.constant 0 : i32
    %c0_i32_1 = arith.constant 0 : i32
    return %c0_i32, %c0_i32_0 : i32, i32
  }
  func.func @transform_13(%arg0: i32) -> (i32, i32) {
    %c0_i32 = arith.constant 0 : i32
    %c0_i32_0 = arith.constant 0 : i32
    return %arg0, %c0_i32 : i32, i32
  }
}

</mosaic_0001>

<llo_original>
// kernel: cnn_forward.1
$region0: #{cnn_forward.1}
  #allocation0 [shape = 'u32[]', space=smem, size = 0x4, offset = 0x4, fixed_abs, tag = 'smem constant byte address 0x4 - core index']
  #allocation1 [shape = 'u32[144,128]{1,0:T(1,128)}', space=vmem, size = 0x12000, scoped, tag = 'internal scratch']
  %s0 = inlined_call_operand.vmem [shape: bf16[16,256], index: 0, kind: input, shape index: {}]
  %s1 = inlined_call_operand.vmem [shape: bf16[16,8], index: 1, kind: input, shape index: {}]
  %s2 = inlined_call_operand.hbm [shape: bf16[256,512], index: 2, kind: input, shape index: {}]
  %s3 = inlined_call_operand.vmem [shape: f32[1,128], index: 3, kind: input, shape index: {}]
  %s4 = inlined_call_operand.vmem [shape: bf16[128,256], index: 4, kind: input, shape index: {}]
  %s5 = inlined_call_operand.vmem [shape: f32[1,256], index: 5, kind: input, shape index: {}]
  %s6 = inlined_call_operand.hbm [shape: bf16[256,256], index: 6, kind: input, shape index: {}]
  %s7 = inlined_call_operand.vmem [shape: bf16[8,256], index: 7, kind: input, shape index: {}]
  %s8 = inlined_call_operand.vmem [shape: f32[1,256], index: 8, kind: input, shape index: {}]
  %s9 = inlined_call_operand.hbm [shape: bf16[256,128], index: 9, kind: input, shape index: {}]
  %s10 = inlined_call_operand.vmem [shape: f32[1,128], index: 10, kind: input, shape index: {}]
  %s11 = inlined_call_operand.hbm [shape: bf16[128,128], index: 11, kind: input, shape index: {}]
  %s12 = inlined_call_operand.vmem [shape: f32[1,128], index: 12, kind: input, shape index: {}]
  %s13 = inlined_call_operand.vmem [shape: bf16[16,128], index: 13, kind: output, shape index: {}]
  %s14 = sld [smem:[#allocation0]]
  $region78: #{cnn_forward.1} parent=0
    _
  %s16 = ssub.s32 1, %s14
  %s17 = scalar_select 0, %s16, %s14
  $region1: #{cnn_forward.1} parent=0
    #allocation2 [shape = 'u8[262144]{0}', space=vmem, size = 0x40000, scoped, tag = 'input window, operand 2, single buffered']
    #allocation3 [shape = 's32[1]{0}', space=sflag, size = 0x4, scoped, tag = 'scoped memory for cnn_forward.1']
    #allocation4 [shape = 'u8[131072]{0}', space=vmem, size = 0x20000, scoped, tag = 'input window, operand 6, single buffered']
    #allocation5 [shape = 's32[1]{0}', space=sflag, size = 0x4, scoped, tag = 'scoped memory for cnn_forward.1']
    #allocation6 [shape = 'u8[65536]{0}', space=vmem, size = 0x10000, scoped, tag = 'input window, operand 9, single buffered']
    #allocation7 [shape = 'u8[32768]{0}', space=vmem, size = 0x8000, scoped, tag = 'input window, operand 11, single buffered']
    #allocation8 [shape = 's32[1]{0}', space=sflag, size = 0x4, scoped, tag = 'scoped memory for cnn_forward.1']
    %18 = vsyncpa [#allocation3], 0
    %19 = vsyncpa [#allocation5], 0
    %20 = vsyncpa [#allocation8], 0
    // Predicated region
    $region2: #{cnn_forward.1} parent=1 // pred_check
      _
    $region3: #{cnn_forward.1} parent=1 // pred_check_branch
      %22 = sbr.rel (0) target = $region5
    $region4: #{cnn_forward.1} parent=1 // pred_region
      _
    $region5: #{cnn_forward.1} parent=1 // pred_fallthru
      _
    // Predicated region
    $region6: #{cnn_forward.1} parent=1 // pred_check
      _
    $region7: #{cnn_forward.1} parent=1 // pred_check_branch
      %24 = sbr.rel (0) target = $region9
    $region8: #{cnn_forward.1} parent=1 // pred_region
      _
    $region9: #{cnn_forward.1} parent=1 // pred_fallthru
      _
    // Predicated region
    $region10: #{cnn_forward.1} parent=1 // pred_check
      _
    $region11: #{cnn_forward.1} parent=1 // pred_check_branch
      %26 = sbr.rel (0) target = $region13
    $region12: #{cnn_forward.1} parent=1 // pred_region
      %s28 = ssub.s32 8192, 8192
      %29 = vsyncadd [#allocation3], %s28
      %s30 = sshll.u32 [#allocation2], 4
      %s31 = int_to_ptr.vmem [resolvable:$true] %s30
      %36 = dma.hbm_to_vmem [thread:$0]  %s2, 8192, %s31, [#allocation3], 256, 256, 16
    $region13: #{cnn_forward.1} parent=1 // pred_fallthru
      _
    // Predicated region
    $region14: #{cnn_forward.1} parent=1 // pred_check
      _
    $region15: #{cnn_forward.1} parent=1 // pred_check_branch
      %38 = sbr.rel (0) target = $region17
    $region16: #{cnn_forward.1} parent=1 // pred_region
      _
    $region17: #{cnn_forward.1} parent=1 // pred_fallthru
      _
    // Predicated region
    $region18: #{cnn_forward.1} parent=1 // pred_check
      _
    $region19: #{cnn_forward.1} parent=1 // pred_check_branch
      %40 = sbr.rel (0) target = $region21
    $region20: #{cnn_forward.1} parent=1 // pred_region
      _
    $region21: #{cnn_forward.1} parent=1 // pred_fallthru
      _
    // Predicated region
    $region22: #{cnn_forward.1} parent=1 // pred_check
      _
    $region23: #{cnn_forward.1} parent=1 // pred_check_branch
      %42 = sbr.rel (0) target = $region25
    $region24: #{cnn_forward.1} parent=1 // pred_region
      _
    $region25: #{cnn_forward.1} parent=1 // pred_fallthru
      _
    // Predicated region
    $region26: #{cnn_forward.1} parent=1 // pred_check
      _
    $region27: #{cnn_forward.1} parent=1 // pred_check_branch
      %44 = sbr.rel (0) target = $region29
    $region28: #{cnn_forward.1} parent=1 // pred_region
      %s46 = ssub.s32 4096, 4096
      %47 = vsyncadd [#allocation5], %s46
      %s48 = sshll.u32 [#allocation4], 4
      %s49 = int_to_ptr.vmem [resolvable:$true] %s48
      %54 = dma.hbm_to_vmem [thread:$0]  %s6, 4096, %s49, [#allocation5], 128, 128, 8
    $region29: #{cnn_forward.1} parent=1 // pred_fallthru
      _
    // Predicated region
    $region30: #{cnn_forward.1} parent=1 // pred_check
      _
    $region31: #{cnn_forward.1} parent=1 // pred_check_branch
      %56 = sbr.rel (0) target = $region33
    $region32: #{cnn_forward.1} parent=1 // pred_region
      _
    $region33: #{cnn_forward.1} parent=1 // pred_fallthru
      _
    // Predicated region
    $region34: #{cnn_forward.1} parent=1 // pred_check
      _
    $region35: #{cnn_forward.1} parent=1 // pred_check_branch
      %58 = sbr.rel (0) target = $region37
    $region36: #{cnn_forward.1} parent=1 // pred_region
      _
    $region37: #{cnn_forward.1} parent=1 // pred_fallthru
      _
    // Predicated region
    $region38: #{cnn_forward.1} parent=1 // pred_check
      _
    $region39: #{cnn_forward.1} parent=1 // pred_check_branch
      %60 = sbr.rel (0) target = $region41
    $region40: #{cnn_forward.1} parent=1 // pred_region
      %s62 = ssub.s32 2048, 2048
      %63 = vsyncadd [#allocation5], %s62
      %s64 = sshll.u32 [#allocation6], 4
      %s65 = int_to_ptr.vmem [resolvable:$true] %s64
      %70 = dma.hbm_to_vmem [thread:$0]  %s9, 2048, %s65, [#allocation5], 64, 64, 4
    $region41: #{cnn_forward.1} parent=1 // pred_fallthru
      _
    // Predicated region
    $region42: #{cnn_forward.1} parent=1 // pred_check
      _
    $region43: #{cnn_forward.1} parent=1 // pred_check_branch
      %72 = sbr.rel (0) target = $region45
    $region44: #{cnn_forward.1} parent=1 // pred_region
      _
    $region45: #{cnn_forward.1} parent=1 // pred_fallthru
      _
    // Predicated region
    $region46: #{cnn_forward.1} parent=1 // pred_check
      _
    $region47: #{cnn_forward.1} parent=1 // pred_check_branch
      %74 = sbr.rel (0) target = $region49
    $region48: #{cnn_forward.1} parent=1 // pred_region
      %s76 = ssub.s32 1024, 1024
      %77 = vsyncadd [#allocation8], %s76
      %s78 = sshll.u32 [#allocation7], 4
      %s79 = int_to_ptr.vmem [resolvable:$true] %s78
      %84 = dma.hbm_to_vmem [thread:$0]  %s11, 1024, %s79, [#allocation8], 64, 64, 4
    $region49: #{cnn_forward.1} parent=1 // pred_fallthru
      _
    // Predicated region
    $region50: #{cnn_forward.1} parent=1 // pred_check
      _
    $region51: #{cnn_forward.1} parent=1 // pred_check_branch
      %86 = sbr.rel (0) target = $region53
    $region52: #{cnn_forward.1} parent=1 // pred_region
      _
    $region53: #{cnn_forward.1} parent=1 // pred_fallthru
      _
    // Predicated region
    $region54: #{cnn_forward.1} parent=1 // pred_check
      _
    $region55: #{cnn_forward.1} parent=1 // pred_check_branch
      %88 = sbr.rel (0) target = $region57
    $region56: #{cnn_forward.1} parent=1 // pred_region
      %89 = dma.done [#allocation3], 8192
    $region57: #{cnn_forward.1} parent=1 // pred_fallthru
      _
    // Predicated region
    $region58: #{cnn_forward.1} parent=1 // pred_check
      _
    $region59: #{cnn_forward.1} parent=1 // pred_check_branch
      %91 = sbr.rel (0) target = $region61
    $region60: #{cnn_forward.1} parent=1 // pred_region
      %92 = dma.done [#allocation5], 4096
    $region61: #{cnn_forward.1} parent=1 // pred_fallthru
      _
    // Predicated region
    $region62: #{cnn_forward.1} parent=1 // pred_check
      _
    $region63: #{cnn_forward.1} parent=1 // pred_check_branch
      %94 = sbr.rel (0) target = $region65
    $region64: #{cnn_forward.1} parent=1 // pred_region
      %95 = dma.done [#allocation5], 2048
    $region65: #{cnn_forward.1} parent=1 // pred_fallthru
      _
    // Predicated region
    $region66: #{cnn_forward.1} parent=1 // pred_check
      _
    $region67: #{cnn_forward.1} parent=1 // pred_check_branch
      %97 = sbr.rel (0) target = $region69
    $region68: #{cnn_forward.1} parent=1 // pred_region
      %98 = dma.done [#allocation8], 1024
    $region69: #{cnn_forward.1} parent=1 // pred_fallthru
      _
    %v100 = vld [vmem:[%s0] sm:$0xff]
    %v101 = vld [vmem:[%s0 + $0x8] sm:$0xff]
    %v102 = vld [vmem:[#allocation2] sm:$0xff]
    %v103 = vld [vmem:[#allocation2 + $0x8] sm:$0xff]
    %v104 = vld [vmem:[#allocation2 + $0x10] sm:$0xff]
    %v105 = vld [vmem:[#allocation2 + $0x18] sm:$0xff]
    %v106 = vld [vmem:[#allocation2 + $0x20] sm:$0xff]
    %v107 = vld [vmem:[#allocation2 + $0x28] sm:$0xff]
    %v108 = vld [vmem:[#allocation2 + $0x30] sm:$0xff]
    %v109 = vld [vmem:[#allocation2 + $0x38] sm:$0xff]
    %v110 = vld [vmem:[#allocation2 + $0x40] sm:$0xff]
    %v111 = vld [vmem:[#allocation2 + $0x48] sm:$0xff]
    %v112 = vld [vmem:[#allocation2 + $0x50] sm:$0xff]
    %v113 = vld [vmem:[#allocation2 + $0x58] sm:$0xff]
    %v114 = vld [vmem:[#allocation2 + $0x60] sm:$0xff]
    %v115 = vld [vmem:[#allocation2 + $0x68] sm:$0xff]
    %v116 = vld [vmem:[#allocation2 + $0x70] sm:$0xff]
    %v117 = vld [vmem:[#allocation2 + $0x78] sm:$0xff]
    %v118 = vld [vmem:[#allocation2 + $0x80] sm:$0xff]
    %v119 = vld [vmem:[#allocation2 + $0x88] sm:$0xff]
    %v120 = vld [vmem:[#allocation2 + $0x90] sm:$0xff]
    %v121 = vld [vmem:[#allocation2 + $0x98] sm:$0xff]
    %v122 = vld [vmem:[#allocation2 + $0xa0] sm:$0xff]
    %v123 = vld [vmem:[#allocation2 + $0xa8] sm:$0xff]
    %v124 = vld [vmem:[#allocation2 + $0xb0] sm:$0xff]
    %v125 = vld [vmem:[#allocation2 + $0xb8] sm:$0xff]
    %v126 = vld [vmem:[#allocation2 + $0xc0] sm:$0xff]
    %v127 = vld [vmem:[#allocation2 + $0xc8] sm:$0xff]
    %v128 = vld [vmem:[#allocation2 + $0xd0] sm:$0xff]
    %v129 = vld [vmem:[#allocation2 + $0xd8] sm:$0xff]
    %v130 = vld [vmem:[#allocation2 + $0xe0] sm:$0xff]
    %v131 = vld [vmem:[#allocation2 + $0xe8] sm:$0xff]
    %v132 = vld [vmem:[#allocation2 + $0xf0] sm:$0xff]
    %v133 = vld [vmem:[#allocation2 + $0xf8] sm:$0xff]
    %v134 = vld [vmem:[#allocation2 + $0x100] sm:$0xff]
    %v135 = vld [vmem:[#allocation2 + $0x108] sm:$0xff]
    %v136 = vld [vmem:[#allocation2 + $0x110] sm:$0xff]
    %v137 = vld [vmem:[#allocation2 + $0x118] sm:$0xff]
    %v138 = vld [vmem:[#allocation2 + $0x120] sm:$0xff]
    %v139 = vld [vmem:[#allocation2 + $0x128] sm:$0xff]
    %v140 = vld [vmem:[#allocation2 + $0x130] sm:$0xff]
    %v141 = vld [vmem:[#allocation2 + $0x138] sm:$0xff]
    %v142 = vld [vmem:[#allocation2 + $0x140] sm:$0xff]
    %v143 = vld [vmem:[#allocation2 + $0x148] sm:$0xff]
    %v144 = vld [vmem:[#allocation2 + $0x150] sm:$0xff]
    %v145 = vld [vmem:[#allocation2 + $0x158] sm:$0xff]
    %v146 = vld [vmem:[#allocation2 + $0x160] sm:$0xff]
    %v147 = vld [vmem:[#allocation2 + $0x168] sm:$0xff]
    %v148 = vld [vmem:[#allocation2 + $0x170] sm:$0xff]
    %v149 = vld [vmem:[#allocation2 + $0x178] sm:$0xff]
    %v150 = vld [vmem:[#allocation2 + $0x180] sm:$0xff]
    %v151 = vld [vmem:[#allocation2 + $0x188] sm:$0xff]
    %v152 = vld [vmem:[#allocation2 + $0x190] sm:$0xff]
    %v153 = vld [vmem:[#allocation2 + $0x198] sm:$0xff]
    %v154 = vld [vmem:[#allocation2 + $0x1a0] sm:$0xff]
    %v155 = vld [vmem:[#allocation2 + $0x1a8] sm:$0xff]
    %v156 = vld [vmem:[#allocation2 + $0x1b0] sm:$0xff]
    %v157 = vld [vmem:[#allocation2 + $0x1b8] sm:$0xff]
    %v158 = vld [vmem:[#allocation2 + $0x1c0] sm:$0xff]
    %v159 = vld [vmem:[#allocation2 + $0x1c8] sm:$0xff]
    %v160 = vld [vmem:[#allocation2 + $0x1d0] sm:$0xff]
    %v161 = vld [vmem:[#allocation2 + $0x1d8] sm:$0xff]
    %v162 = vld [vmem:[#allocation2 + $0x1e0] sm:$0xff]
    %v163 = vld [vmem:[#allocation2 + $0x1e8] sm:$0xff]
    %v164 = vld [vmem:[#allocation2 + $0x1f0] sm:$0xff]
    %v165 = vld [vmem:[#allocation2 + $0x1f8] sm:$0xff]
    %v168 = vunpack.c.l.b16 %v100
    %v169 = vunpack.c.h.b16 %v100
    %v170 = vunpack.c.l.b16 %v101
    %v171 = vunpack.c.h.b16 %v101
    %v172 = vpack.c.b16 %v170, %v168
    %v173 = vpack.c.b16 %v171, %v169
    %v240 = vunpack.c.l.b16 %v102
    %v241 = vunpack.c.h.b16 %v102
    %v242 = vunpack.c.l.b16 %v103
    %v243 = vunpack.c.h.b16 %v103
    %v244 = vunpack.c.l.b16 %v104
    %v245 = vunpack.c.h.b16 %v104
    %v246 = vunpack.c.l.b16 %v105
    %v247 = vunpack.c.h.b16 %v105
    %v248 = vunpack.c.l.b16 %v106
    %v249 = vunpack.c.h.b16 %v106
    %v250 = vunpack.c.l.b16 %v107
    %v251 = vunpack.c.h.b16 %v107
    %v252 = vunpack.c.l.b16 %v108
    %v253 = vunpack.c.h.b16 %v108
    %v254 = vunpack.c.l.b16 %v109
    %v255 = vunpack.c.h.b16 %v109
    %v256 = vunpack.c.l.b16 %v110
    %v257 = vunpack.c.h.b16 %v110
    %v258 = vunpack.c.l.b16 %v111
    %v259 = vunpack.c.h.b16 %v111
    %v260 = vunpack.c.l.b16 %v112
    %v261 = vunpack.c.h.b16 %v112
    %v262 = vunpack.c.l.b16 %v113
    %v263 = vunpack.c.h.b16 %v113
    %v264 = vunpack.c.l.b16 %v114
    %v265 = vunpack.c.h.b16 %v114
    %v266 = vunpack.c.l.b16 %v115
    %v267 = vunpack.c.h.b16 %v115
    %v268 = vunpack.c.l.b16 %v116
    %v269 = vunpack.c.h.b16 %v116
    %v270 = vunpack.c.l.b16 %v117
    %v271 = vunpack.c.h.b16 %v117
    %v272 = vunpack.c.l.b16 %v118
    %v273 = vunpack.c.h.b16 %v118
    %v274 = vunpack.c.l.b16 %v119
    %v275 = vunpack.c.h.b16 %v119
    %v276 = vunpack.c.l.b16 %v120
    %v277 = vunpack.c.h.b16 %v120
    %v278 = vunpack.c.l.b16 %v121
    %v279 = vunpack.c.h.b16 %v121
    %v280 = vunpack.c.l.b16 %v122
    %v281 = vunpack.c.h.b16 %v122
    %v282 = vunpack.c.l.b16 %v123
    %v283 = vunpack.c.h.b16 %v123
    %v284 = vunpack.c.l.b16 %v124
    %v285 = vunpack.c.h.b16 %v124
    %v286 = vunpack.c.l.b16 %v125
    %v287 = vunpack.c.h.b16 %v125
    %v288 = vunpack.c.l.b16 %v126
    %v289 = vunpack.c.h.b16 %v126
    %v290 = vunpack.c.l.b16 %v127
    %v291 = vunpack.c.h.b16 %v127
    %v292 = vunpack.c.l.b16 %v128
    %v293 = vunpack.c.h.b16 %v128
    %v294 = vunpack.c.l.b16 %v129
    %v295 = vunpack.c.h.b16 %v129
    %v296 = vunpack.c.l.b16 %v130
    %v297 = vunpack.c.h.b16 %v130
    %v298 = vunpack.c.l.b16 %v131
    %v299 = vunpack.c.h.b16 %v131
    %v300 = vunpack.c.l.b16 %v132
    %v301 = vunpack.c.h.b16 %v132
    %v302 = vunpack.c.l.b16 %v133
    %v303 = vunpack.c.h.b16 %v133
    %v304 = vunpack.c.l.b16 %v134
    %v305 = vunpack.c.h.b16 %v134
    %v306 = vunpack.c.l.b16 %v135
    %v307 = vunpack.c.h.b16 %v135
    %v308 = vunpack.c.l.b16 %v136
    %v309 = vunpack.c.h.b16 %v136
    %v310 = vunpack.c.l.b16 %v137
    %v311 = vunpack.c.h.b16 %v137
    %v312 = vunpack.c.l.b16 %v138
    %v313 = vunpack.c.h.b16 %v138
    %v314 = vunpack.c.l.b16 %v139
    %v315 = vunpack.c.h.b16 %v139
    %v316 = vunpack.c.l.b16 %v140
    %v317 = vunpack.c.h.b16 %v140
    %v318 = vunpack.c.l.b16 %v141
    %v319 = vunpack.c.h.b16 %v141
    %v320 = vunpack.c.l.b16 %v142
    %v321 = vunpack.c.h.b16 %v142
    %v322 = vunpack.c.l.b16 %v143
    %v323 = vunpack.c.h.b16 %v143
    %v324 = vunpack.c.l.b16 %v144
    %v325 = vunpack.c.h.b16 %v144
    %v326 = vunpack.c.l.b16 %v145
    %v327 = vunpack.c.h.b16 %v145
    %v328 = vunpack.c.l.b16 %v146
    %v329 = vunpack.c.h.b16 %v146
    %v330 = vunpack.c.l.b16 %v147
    %v331 = vunpack.c.h.b16 %v147
    %v332 = vunpack.c.l.b16 %v148
    %v333 = vunpack.c.h.b16 %v148
    %v334 = vunpack.c.l.b16 %v149
    %v335 = vunpack.c.h.b16 %v149
    %v336 = vunpack.c.l.b16 %v150
    %v337 = vunpack.c.h.b16 %v150
    %v338 = vunpack.c.l.b16 %v151
    %v339 = vunpack.c.h.b16 %v151
    %v340 = vunpack.c.l.b16 %v152
    %v341 = vunpack.c.h.b16 %v152
    %v342 = vunpack.c.l.b16 %v153
    %v343 = vunpack.c.h.b16 %v153
    %v344 = vunpack.c.l.b16 %v154
    %v345 = vunpack.c.h.b16 %v154
    %v346 = vunpack.c.l.b16 %v155
    %v347 = vunpack.c.h.b16 %v155
    %v348 = vunpack.c.l.b16 %v156
    %v349 = vunpack.c.h.b16 %v156
    %v350 = vunpack.c.l.b16 %v157
    %v351 = vunpack.c.h.b16 %v157
    %v352 = vunpack.c.l.b16 %v158
    %v353 = vunpack.c.h.b16 %v158
    %v354 = vunpack.c.l.b16 %v159
    %v355 = vunpack.c.h.b16 %v159
    %v356 = vunpack.c.l.b16 %v160
    %v357 = vunpack.c.h.b16 %v160
    %v358 = vunpack.c.l.b16 %v161
    %v359 = vunpack.c.h.b16 %v161
    %v360 = vunpack.c.l.b16 %v162
    %v361 = vunpack.c.h.b16 %v162
    %v362 = vunpack.c.l.b16 %v163
    %v363 = vunpack.c.h.b16 %v163
    %v364 = vunpack.c.l.b16 %v164
    %v365 = vunpack.c.h.b16 %v164
    %v366 = vunpack.c.l.b16 %v165
    %v367 = vunpack.c.h.b16 %v165
    %v368 = vpack.c.b16 %v244, %v240
    %v369 = vpack.c.b16 %v245, %v241
    %v370 = vpack.c.b16 %v246, %v242
    %v371 = vpack.c.b16 %v247, %v243
    %v372 = vpack.c.b16 %v252, %v248
    %v373 = vpack.c.b16 %v253, %v249
    %v374 = vpack.c.b16 %v254, %v250
    %v375 = vpack.c.b16 %v255, %v251
    %v376 = vpack.c.b16 %v260, %v256
    %v377 = vpack.c.b16 %v261, %v257
    %v378 = vpack.c.b16 %v262, %v258
    %v379 = vpack.c.b16 %v263, %v259
    %v380 = vpack.c.b16 %v268, %v264
    %v381 = vpack.c.b16 %v269, %v265
    %v382 = vpack.c.b16 %v270, %v266
    %v383 = vpack.c.b16 %v271, %v267
    %v384 = vpack.c.b16 %v276, %v272
    %v385 = vpack.c.b16 %v277, %v273
    %v386 = vpack.c.b16 %v278, %v274
    %v387 = vpack.c.b16 %v279, %v275
    %v388 = vpack.c.b16 %v284, %v280
    %v389 = vpack.c.b16 %v285, %v281
    %v390 = vpack.c.b16 %v286, %v282
    %v391 = vpack.c.b16 %v287, %v283
    %v392 = vpack.c.b16 %v292, %v288
    %v393 = vpack.c.b16 %v293, %v289
    %v394 = vpack.c.b16 %v294, %v290
    %v395 = vpack.c.b16 %v295, %v291
    %v396 = vpack.c.b16 %v300, %v296
    %v397 = vpack.c.b16 %v301, %v297
    %v398 = vpack.c.b16 %v302, %v298
    %v399 = vpack.c.b16 %v303, %v299
    %v400 = vpack.c.b16 %v308, %v304
    %v401 = vpack.c.b16 %v309, %v305
    %v402 = vpack.c.b16 %v310, %v306
    %v403 = vpack.c.b16 %v311, %v307
    %v404 = vpack.c.b16 %v316, %v312
    %v405 = vpack.c.b16 %v317, %v313
    %v406 = vpack.c.b16 %v318, %v314
    %v407 = vpack.c.b16 %v319, %v315
    %v408 = vpack.c.b16 %v324, %v320
    %v409 = vpack.c.b16 %v325, %v321
    %v410 = vpack.c.b16 %v326, %v322
    %v411 = vpack.c.b16 %v327, %v323
    %v412 = vpack.c.b16 %v332, %v328
    %v413 = vpack.c.b16 %v333, %v329
    %v414 = vpack.c.b16 %v334, %v330
    %v415 = vpack.c.b16 %v335, %v331
    %v416 = vpack.c.b16 %v340, %v336
    %v417 = vpack.c.b16 %v341, %v337
    %v418 = vpack.c.b16 %v342, %v338
    %v419 = vpack.c.b16 %v343, %v339
    %v420 = vpack.c.b16 %v348, %v344
    %v421 = vpack.c.b16 %v349, %v345
    %v422 = vpack.c.b16 %v350, %v346
    %v423 = vpack.c.b16 %v351, %v347
    %v424 = vpack.c.b16 %v356, %v352
    %v425 = vpack.c.b16 %v357, %v353
    %v426 = vpack.c.b16 %v358, %v354
    %v427 = vpack.c.b16 %v359, %v355
    %v428 = vpack.c.b16 %v364, %v360
    %v429 = vpack.c.b16 %v365, %v361
    %v430 = vpack.c.b16 %v366, %v362
    %v431 = vpack.c.b16 %v367, %v363
    %496 = vmatprep.subr.bf16.mxu0 %v369
    %497 = vmatpush1.bf16.msra.mxu0 %v368
    %498 = vmatprep.subr.bf16.mxu0 %v373
    %499 = vmatpush1.bf16.msra.mxu0 %v372
    %500 = vmatprep.subr.bf16.mxu0 %v377
    %501 = vmatpush1.bf16.msra.mxu0 %v376
    %502 = vmatprep.subr.bf16.mxu0 %v381
    %503 = vmatpush1.bf16.msra.mxu0 %v380
    %504 = vmatprep.subr.bf16.mxu0 %v385
    %505 = vmatpush1.bf16.msra.mxu0 %v384
    %506 = vmatprep.subr.bf16.mxu0 %v389
    %507 = vmatpush1.bf16.msra.mxu0 %v388
    %508 = vmatprep.subr.bf16.mxu0 %v393
    %509 = vmatpush1.bf16.msra.mxu0 %v392
    %510 = vmatprep.subr.bf16.mxu0 %v397
    %511 = vmatpush1.bf16.msra.mxu0 %v396
    %512 = vmatprep.subr.bf16.mxu0 %v401
    %513 = vmatpush1.bf16.msra.mxu0 %v400
    %514 = vmatprep.subr.bf16.mxu0 %v405
    %515 = vmatpush1.bf16.msra.mxu0 %v404
    %516 = vmatprep.subr.bf16.mxu0 %v409
    %517 = vmatpush1.bf16.msra.mxu0 %v408
    %518 = vmatprep.subr.bf16.mxu0 %v413
    %519 = vmatpush1.bf16.msra.mxu0 %v412
    %520 = vmatprep.subr.bf16.mxu0 %v417
    %521 = vmatpush1.bf16.msra.mxu0 %v416
    %522 = vmatprep.subr.bf16.mxu0 %v421
    %523 = vmatpush1.bf16.msra.mxu0 %v420
    %524 = vmatprep.subr.bf16.mxu0 %v425
    %525 = vmatpush1.bf16.msra.mxu0 %v424
    %526 = vmatprep.subr.bf16.mxu0 %v429
    %527 = vmatpush1.bf16.msra.mxu0 %v428
    %528 = vmatprep.mubr.bf16.mxu0 %v173
    %529 = vmatmul.mubr.bf16.gmra.mrb[0].mxu0 %v172
    %v530 = vpop.f32.mrb[0].mxu0
    %v531 = vadd.f32 0.0, %v530
    %v532 = vpop.f32.mrb[0].mxu0
    %v533 = vadd.f32 0.0, %v532
    %v534 = vpop.f32.mrb[0].mxu0
    %v535 = vadd.f32 0.0, %v534
    %v536 = vpop.f32.mrb[0].mxu0
    %v537 = vadd.f32 0.0, %v536
    %538 = vdwg.mxu0
    %539 = vmatprep.subr.bf16.mxu0 %v371
    %540 = vmatpush1.bf16.msra.mxu0 %v370
    %541 = vmatprep.subr.bf16.mxu0 %v375
    %542 = vmatpush1.bf16.msra.mxu0 %v374
    %543 = vmatprep.subr.bf16.mxu0 %v379
    %544 = vmatpush1.bf16.msra.mxu0 %v378
    %545 = vmatprep.subr.bf16.mxu0 %v383
    %546 = vmatpush1.bf16.msra.mxu0 %v382
    %547 = vmatprep.subr.bf16.mxu0 %v387
    %548 = vmatpush1.bf16.msra.mxu0 %v386
    %549 = vmatprep.subr.bf16.mxu0 %v391
    %550 = vmatpush1.bf16.msra.mxu0 %v390
    %551 = vmatprep.subr.bf16.mxu0 %v395
    %552 = vmatpush1.bf16.msra.mxu0 %v394
    %553 = vmatprep.subr.bf16.mxu0 %v399
    %554 = vmatpush1.bf16.msra.mxu0 %v398
    %555 = vmatprep.subr.bf16.mxu0 %v403
    %556 = vmatpush1.bf16.msra.mxu0 %v402
    %557 = vmatprep.subr.bf16.mxu0 %v407
    %558 = vmatpush1.bf16.msra.mxu0 %v406
    %559 = vmatprep.subr.bf16.mxu0 %v411
    %560 = vmatpush1.bf16.msra.mxu0 %v410
    %561 = vmatprep.subr.bf16.mxu0 %v415
    %562 = vmatpush1.bf16.msra.mxu0 %v414
    %563 = vmatprep.subr.bf16.mxu0 %v419
    %564 = vmatpush1.bf16.msra.mxu0 %v418
    %565 = vmatprep.subr.bf16.mxu0 %v423
    %566 = vmatpush1.bf16.msra.mxu0 %v422
    %567 = vmatprep.subr.bf16.mxu0 %v427
    %568 = vmatpush1.bf16.msra.mxu0 %v426
    %569 = vmatprep.subr.bf16.mxu0 %v431
    %570 = vmatpush1.bf16.msra.mxu0 %v430
    %571 = vmatprep.mubr.bf16.mxu0 %v173
    %572 = vmatmul.mubr.bf16.gmra.mrb[0].mxu0 %v172
    %v573 = vpop.f32.mrb[0].mxu0
    %v574 = vadd.f32 0.0, %v573
    %v575 = vpop.f32.mrb[0].mxu0
    %v576 = vadd.f32 0.0, %v575
    %v577 = vpop.f32.mrb[0].mxu0
    %v578 = vadd.f32 0.0, %v577
    %v579 = vpop.f32.mrb[0].mxu0
    %v580 = vadd.f32 0.0, %v579
    %581 = vdwg.mxu0
    %v582 = vmax.f32 %v531, %v533
    %v583 = vmax.f32 %v535, %v537
    %v584 = vmax.f32 %v574, %v576
    %v585 = vmax.f32 %v578, %v580
    %v586 = vmax.f32 %v582, %v584
    %v587 = vmax.f32 %v583, %v585
    %v588 = vld [vmem:[%s3] sm:$0x1]
    %v590 = vlaneseq
    %v591 = vshrl.u32 %v590, 7
    %v592 = vsub.s32 0, %v591
    %v593 = vrot.slane %v588, %v592
    %v595 = vadd.f32 %v586, %v593
    %v596 = vadd.f32 %v587, %v593
    %v597 = vmax.f32 %v595, 0.0
    %v598 = vmax.f32 %v596, 0.0
    %v599 = vpack.c.bf16 %v598, %v597
    %v600 = vld [vmem:[%s4] sm:$0xff]
    %v601 = vld [vmem:[%s4 + $0x8] sm:$0xff]
    %v602 = vld [vmem:[%s4 + $0x10] sm:$0xff]
    %v603 = vld [vmem:[%s4 + $0x18] sm:$0xff]
    %v604 = vld [vmem:[%s4 + $0x20] sm:$0xff]
    %v605 = vld [vmem:[%s4 + $0x28] sm:$0xff]
    %v606 = vld [vmem:[%s4 + $0x30] sm:$0xff]
    %v607 = vld [vmem:[%s4 + $0x38] sm:$0xff]
    %v608 = vld [vmem:[%s4 + $0x40] sm:$0xff]
    %v609 = vld [vmem:[%s4 + $0x48] sm:$0xff]
    %v610 = vld [vmem:[%s4 + $0x50] sm:$0xff]
    %v611 = vld [vmem:[%s4 + $0x58] sm:$0xff]
    %v612 = vld [vmem:[%s4 + $0x60] sm:$0xff]
    %v613 = vld [vmem:[%s4 + $0x68] sm:$0xff]
    %v614 = vld [vmem:[%s4 + $0x70] sm:$0xff]
    %v615 = vld [vmem:[%s4 + $0x78] sm:$0xff]
    %v616 = vld [vmem:[%s5] sm:$0x3]
    %v618 = vlaneseq
    %v619 = vshrl.u32 %v618, 7
    %v620 = vsub.s32 0, %v619
    %v621 = vrot.slane %v616, %v620
    %v622 = vlaneseq
    %v623 = vshrl.u32 %v622, 7
    %v624 = vsub.s32 1, %v623
    %v625 = vrot.slane %v616, %v624
    %v644 = vunpack.c.l.b16 %v600
    %v645 = vunpack.c.h.b16 %v600
    %v646 = vunpack.c.l.b16 %v601
    %v647 = vunpack.c.h.b16 %v601
    %v648 = vunpack.c.l.b16 %v602
    %v649 = vunpack.c.h.b16 %v602
    %v650 = vunpack.c.l.b16 %v603
    %v651 = vunpack.c.h.b16 %v603
    %v652 = vunpack.c.l.b16 %v604
    %v653 = vunpack.c.h.b16 %v604
    %v654 = vunpack.c.l.b16 %v605
    %v655 = vunpack.c.h.b16 %v605
    %v656 = vunpack.c.l.b16 %v606
    %v657 = vunpack.c.h.b16 %v606
    %v658 = vunpack.c.l.b16 %v607
    %v659 = vunpack.c.h.b16 %v607
    %v660 = vunpack.c.l.b16 %v608
    %v661 = vunpack.c.h.b16 %v608
    %v662 = vunpack.c.l.b16 %v609
    %v663 = vunpack.c.h.b16 %v609
    %v664 = vunpack.c.l.b16 %v610
    %v665 = vunpack.c.h.b16 %v610
    %v666 = vunpack.c.l.b16 %v611
    %v667 = vunpack.c.h.b16 %v611
    %v668 = vunpack.c.l.b16 %v612
    %v669 = vunpack.c.h.b16 %v612
    %v670 = vunpack.c.l.b16 %v613
    %v671 = vunpack.c.h.b16 %v613
    %v672 = vunpack.c.l.b16 %v614
    %v673 = vunpack.c.h.b16 %v614
    %v674 = vunpack.c.l.b16 %v615
    %v675 = vunpack.c.h.b16 %v615
    %v676 = vpack.c.b16 %v646, %v644
    %v677 = vpack.c.b16 %v647, %v645
    %v678 = vpack.c.b16 %v650, %v648
    %v679 = vpack.c.b16 %v651, %v649
    %v680 = vpack.c.b16 %v654, %v652
    %v681 = vpack.c.b16 %v655, %v653
    %v682 = vpack.c.b16 %v658, %v656
    %v683 = vpack.c.b16 %v659, %v657
    %v684 = vpack.c.b16 %v662, %v660
    %v685 = vpack.c.b16 %v663, %v661
    %v686 = vpack.c.b16 %v666, %v664
    %v687 = vpack.c.b16 %v667, %v665
    %v688 = vpack.c.b16 %v670, %v668
    %v689 = vpack.c.b16 %v671, %v669
    %v690 = vpack.c.b16 %v674, %v672
    %v691 = vpack.c.b16 %v675, %v673
    %708 = vmatprep.subr.bf16.mxu0 %v677
    %709 = vmatpush1.bf16.msra.mxu0 %v676
    %710 = vmatprep.subr.bf16.mxu0 %v679
    %711 = vmatpush1.bf16.msra.mxu0 %v678
    %712 = vmatprep.subr.bf16.mxu0 %v681
    %713 = vmatpush1.bf16.msra.mxu0 %v680
    %714 = vmatprep.subr.bf16.mxu0 %v683
    %715 = vmatpush1.bf16.msra.mxu0 %v682
    %716 = vmatprep.subr.bf16.mxu0 %v685
    %717 = vmatpush1.bf16.msra.mxu0 %v684
    %718 = vmatprep.subr.bf16.mxu0 %v687
    %719 = vmatpush1.bf16.msra.mxu0 %v686
    %720 = vmatprep.subr.bf16.mxu0 %v689
    %721 = vmatpush1.bf16.msra.mxu0 %v688
    %722 = vmatprep.subr.bf16.mxu0 %v691
    %723 = vmatpush1.bf16.msra.mxu0 %v690
    %724 = vmatprep.subr.bf16.mxu0 0
    %725 = vmatpush1.bf16.msra.mxu0 0
    %726 = vmatprep.subr.bf16.mxu0 0
    %727 = vmatpush1.bf16.msra.mxu0 0
    %728 = vmatprep.subr.bf16.mxu0 0
    %729 = vmatpush1.bf16.msra.mxu0 0
    %730 = vmatprep.subr.bf16.mxu0 0
    %731 = vmatpush1.bf16.msra.mxu0 0
    %732 = vmatprep.subr.bf16.mxu0 0
    %733 = vmatpush1.bf16.msra.mxu0 0
    %734 = vmatprep.subr.bf16.mxu0 0
    %735 = vmatpush1.bf16.msra.mxu0 0
    %736 = vmatprep.subr.bf16.mxu0 0
    %737 = vmatpush1.bf16.msra.mxu0 0
    %738 = vmatprep.subr.bf16.mxu0 0
    %739 = vmatpush1.bf16.msra.mxu0 0
    %740 = vmatprep.mubr.bf16.mxu0 0
    %741 = vmatmul.mubr.bf16.gmra.mrb[0].mxu0 %v599
    %v742 = vpop.f32.mrb[0].mxu0
    %v743 = vadd.f32 %v621, %v742
    %v744 = vpop.f32.mrb[0].mxu0
    %v745 = vadd.f32 %v625, %v744
    %v746 = vpop.f32.mrb[0].mxu0
    %v747 = vadd.f32 %v621, %v746
    %v748 = vpop.f32.mrb[0].mxu0
    %v749 = vadd.f32 %v625, %v748
    %750 = vdwg.mxu0
    %v751 = vmax.f32 %v743, 0.0
    %v752 = vmax.f32 %v745, 0.0
    %v753 = vmax.f32 %v747, 0.0
    %v754 = vmax.f32 %v749, 0.0
    %v755 = vpack.c.bf16 %v753, %v751
    %v756 = vpack.c.bf16 %v754, %v752
    %v757 = vld [vmem:[#allocation4] sm:$0xff]
    %v758 = vld [vmem:[#allocation4 + $0x8] sm:$0xff]
    %v759 = vld [vmem:[#allocation4 + $0x10] sm:$0xff]
    %v760 = vld [vmem:[#allocation4 + $0x18] sm:$0xff]
    %v761 = vld [vmem:[#allocation4 + $0x20] sm:$0xff]
    %v762 = vld [vmem:[#allocation4 + $0x28] sm:$0xff]
    %v763 = vld [vmem:[#allocation4 + $0x30] sm:$0xff]
    %v764 = vld [vmem:[#allocation4 + $0x38] sm:$0xff]
    %v765 = vld [vmem:[#allocation4 + $0x40] sm:$0xff]
    %v766 = vld [vmem:[#allocation4 + $0x48] sm:$0xff]
    %v767 = vld [vmem:[#allocation4 + $0x50] sm:$0xff]
    %v768 = vld [vmem:[#allocation4 + $0x58] sm:$0xff]
    %v769 = vld [vmem:[#allocation4 + $0x60] sm:$0xff]
    %v770 = vld [vmem:[#allocation4 + $0x68] sm:$0xff]
    %v771 = vld [vmem:[#allocation4 + $0x70] sm:$0xff]
    %v772 = vld [vmem:[#allocation4 + $0x78] sm:$0xff]
    %v773 = vld [vmem:[#allocation4 + $0x80] sm:$0xff]
    %v774 = vld [vmem:[#allocation4 + $0x88] sm:$0xff]
    %v775 = vld [vmem:[#allocation4 + $0x90] sm:$0xff]
    %v776 = vld [vmem:[#allocation4 + $0x98] sm:$0xff]
    %v777 = vld [vmem:[#allocation4 + $0xa0] sm:$0xff]
    %v778 = vld [vmem:[#allocation4 + $0xa8] sm:$0xff]
    %v779 = vld [vmem:[#allocation4 + $0xb0] sm:$0xff]
    %v780 = vld [vmem:[#allocation4 + $0xb8] sm:$0xff]
    %v781 = vld [vmem:[#allocation4 + $0xc0] sm:$0xff]
    %v782 = vld [vmem:[#allocation4 + $0xc8] sm:$0xff]
    %v783 = vld [vmem:[#allocation4 + $0xd0] sm:$0xff]
    %v784 = vld [vmem:[#allocation4 + $0xd8] sm:$0xff]
    %v785 = vld [vmem:[#allocation4 + $0xe0] sm:$0xff]
    %v786 = vld [vmem:[#allocation4 + $0xe8] sm:$0xff]
    %v787 = vld [vmem:[#allocation4 + $0xf0] sm:$0xff]
    %v788 = vld [vmem:[#allocation4 + $0xf8] sm:$0xff]
    %v789 = vld [vmem:[%s1] sm:$0xf]
    %v790 = vld [vmem:[%s1 + $0x4] sm:$0xf]
    %v791 = vld [vmem:[%s7] sm:$0xff]
    %v794 = vunpack.c.l.b16 %v789
    %v795 = vunpack.c.l.b16 %v790
    %v796 = vpack.c.b16 %v795, %v794
    %v798 = vunpack.c.l.b16 %v791
    %v799 = vunpack.c.h.b16 %v791
    %v800 = vpack.c.b16 %v798, %v798
    %v801 = vpack.c.b16 %v799, %v799
    %vm802 = vcmask 64512
    %v804 = vsel %vm802, %v796, 0
    %vm806 = vcmask 1043456
    %v808 = vsel %vm806, %v800, 0
    %v811 = vsel %vm806, %v801, 0
    %813 = vmatprep.subr.bf16.mxu0 %v811
    %814 = vmatpush1.bf16.msra.mxu0 %v808
    %815 = vmatprep.subr.bf16.mxu0 0
    %816 = vmatpush1.bf16.msra.mxu0 0
    %817 = vmatprep.subr.bf16.mxu0 0
    %818 = vmatpush1.bf16.msra.mxu0 0
    %819 = vmatprep.subr.bf16.mxu0 0
    %820 = vmatpush1.bf16.msra.mxu0 0
    %821 = vmatprep.subr.bf16.mxu0 0
    %822 = vmatpush1.bf16.msra.mxu0 0
    %823 = vmatprep.subr.bf16.mxu0 0
    %824 = vmatpush1.bf16.msra.mxu0 0
    %825 = vmatprep.subr.bf16.mxu0 0
    %826 = vmatpush1.bf16.msra.mxu0 0
    %827 = vmatprep.subr.bf16.mxu0 0
    %828 = vmatpush1.bf16.msra.mxu0 0
    %829 = vmatprep.subr.bf16.mxu0 0
    %830 = vmatpush1.bf16.msra.mxu0 0
    %831 = vmatprep.subr.bf16.mxu0 0
    %832 = vmatpush1.bf16.msra.mxu0 0
    %833 = vmatprep.subr.bf16.mxu0 0
    %834 = vmatpush1.bf16.msra.mxu0 0
    %835 = vmatprep.subr.bf16.mxu0 0
    %836 = vmatpush1.bf16.msra.mxu0 0
    %837 = vmatprep.subr.bf16.mxu0 0
    %838 = vmatpush1.bf16.msra.mxu0 0
    %839 = vmatprep.subr.bf16.mxu0 0
    %840 = vmatpush1.bf16.msra.mxu0 0
    %841 = vmatprep.subr.bf16.mxu0 0
    %842 = vmatpush1.bf16.msra.mxu0 0
    %843 = vmatprep.subr.bf16.mxu0 0
    %844 = vmatpush1.bf16.msra.mxu0 0
    %845 = vmatprep.mubr.bf16.mxu0 0
    %846 = vmatmul.mubr.bf16.gmra.mrb[0].mxu0 %v804
    %v847 = vpop.f32.mrb[0].mxu0
    %v848 = vadd.f32 0.0, %v847
    %v849 = vpop.f32.mrb[0].mxu0
    %v850 = vadd.f32 0.0, %v849
    %v851 = vpop.f32.mrb[0].mxu0
    %v852 = vadd.f32 0.0, %v851
    %v853 = vpop.f32.mrb[0].mxu0
    %v854 = vadd.f32 0.0, %v853
    %855 = vdwg.mxu0
    %v888 = vunpack.c.l.b16 %v757
    %v889 = vunpack.c.h.b16 %v757
    %v890 = vunpack.c.l.b16 %v758
    %v891 = vunpack.c.h.b16 %v758
    %v892 = vunpack.c.l.b16 %v759
    %v893 = vunpack.c.h.b16 %v759
    %v894 = vunpack.c.l.b16 %v760
    %v895 = vunpack.c.h.b16 %v760
    %v896 = vunpack.c.l.b16 %v761
    %v897 = vunpack.c.h.b16 %v761
    %v898 = vunpack.c.l.b16 %v762
    %v899 = vunpack.c.h.b16 %v762
    %v900 = vunpack.c.l.b16 %v763
    %v901 = vunpack.c.h.b16 %v763
    %v902 = vunpack.c.l.b16 %v764
    %v903 = vunpack.c.h.b16 %v764
    %v904 = vunpack.c.l.b16 %v765
    %v905 = vunpack.c.h.b16 %v765
    %v906 = vunpack.c.l.b16 %v766
    %v907 = vunpack.c.h.b16 %v766
    %v908 = vunpack.c.l.b16 %v767
    %v909 = vunpack.c.h.b16 %v767
    %v910 = vunpack.c.l.b16 %v768
    %v911 = vunpack.c.h.b16 %v768
    %v912 = vunpack.c.l.b16 %v769
    %v913 = vunpack.c.h.b16 %v769
    %v914 = vunpack.c.l.b16 %v770
    %v915 = vunpack.c.h.b16 %v770
    %v916 = vunpack.c.l.b16 %v771
    %v917 = vunpack.c.h.b16 %v771
    %v918 = vunpack.c.l.b16 %v772
    %v919 = vunpack.c.h.b16 %v772
    %v920 = vunpack.c.l.b16 %v773
    %v921 = vunpack.c.h.b16 %v773
    %v922 = vunpack.c.l.b16 %v774
    %v923 = vunpack.c.h.b16 %v774
    %v924 = vunpack.c.l.b16 %v775
    %v925 = vunpack.c.h.b16 %v775
    %v926 = vunpack.c.l.b16 %v776
    %v927 = vunpack.c.h.b16 %v776
    %v928 = vunpack.c.l.b16 %v777
    %v929 = vunpack.c.h.b16 %v777
    %v930 = vunpack.c.l.b16 %v778
    %v931 = vunpack.c.h.b16 %v778
    %v932 = vunpack.c.l.b16 %v779
    %v933 = vunpack.c.h.b16 %v779
    %v934 = vunpack.c.l.b16 %v780
    %v935 = vunpack.c.h.b16 %v780
    %v936 = vunpack.c.l.b16 %v781
    %v937 = vunpack.c.h.b16 %v781
    %v938 = vunpack.c.l.b16 %v782
    %v939 = vunpack.c.h.b16 %v782
    %v940 = vunpack.c.l.b16 %v783
    %v941 = vunpack.c.h.b16 %v783
    %v942 = vunpack.c.l.b16 %v784
    %v943 = vunpack.c.h.b16 %v784
    %v944 = vunpack.c.l.b16 %v785
    %v945 = vunpack.c.h.b16 %v785
    %v946 = vunpack.c.l.b16 %v786
    %v947 = vunpack.c.h.b16 %v786
    %v948 = vunpack.c.l.b16 %v787
    %v949 = vunpack.c.h.b16 %v787
    %v950 = vunpack.c.l.b16 %v788
    %v951 = vunpack.c.h.b16 %v788
    %v952 = vpack.c.b16 %v890, %v888
    %v953 = vpack.c.b16 %v891, %v889
    %v954 = vpack.c.b16 %v894, %v892
    %v955 = vpack.c.b16 %v895, %v893
    %v956 = vpack.c.b16 %v898, %v896
    %v957 = vpack.c.b16 %v899, %v897
    %v958 = vpack.c.b16 %v902, %v900
    %v959 = vpack.c.b16 %v903, %v901
    %v960 = vpack.c.b16 %v906, %v904
    %v961 = vpack.c.b16 %v907, %v905
    %v962 = vpack.c.b16 %v910, %v908
    %v963 = vpack.c.b16 %v911, %v909
    %v964 = vpack.c.b16 %v914, %v912
    %v965 = vpack.c.b16 %v915, %v913
    %v966 = vpack.c.b16 %v918, %v916
    %v967 = vpack.c.b16 %v919, %v917
    %v968 = vpack.c.b16 %v922, %v920
    %v969 = vpack.c.b16 %v923, %v921
    %v970 = vpack.c.b16 %v926, %v924
    %v971 = vpack.c.b16 %v927, %v925
    %v972 = vpack.c.b16 %v930, %v928
    %v973 = vpack.c.b16 %v931, %v929
    %v974 = vpack.c.b16 %v934, %v932
    %v975 = vpack.c.b16 %v935, %v933
    %v976 = vpack.c.b16 %v938, %v936
    %v977 = vpack.c.b16 %v939, %v937
    %v978 = vpack.c.b16 %v942, %v940
    %v979 = vpack.c.b16 %v943, %v941
    %v980 = vpack.c.b16 %v946, %v944
    %v981 = vpack.c.b16 %v947, %v945
    %v982 = vpack.c.b16 %v950, %v948
    %v983 = vpack.c.b16 %v951, %v949
    %1016 = vmatprep.subr.bf16.mxu0 %v953
    %1017 = vmatpush1.bf16.msra.mxu0 %v952
    %1018 = vmatprep.subr.bf16.mxu0 %v955
    %1019 = vmatpush1.bf16.msra.mxu0 %v954
    %1020 = vmatprep.subr.bf16.mxu0 %v957
    %1021 = vmatpush1.bf16.msra.mxu0 %v956
    %1022 = vmatprep.subr.bf16.mxu0 %v959
    %1023 = vmatpush1.bf16.msra.mxu0 %v958
    %1024 = vmatprep.subr.bf16.mxu0 %v961
    %1025 = vmatpush1.bf16.msra.mxu0 %v960
    %1026 = vmatprep.subr.bf16.mxu0 %v963
    %1027 = vmatpush1.bf16.msra.mxu0 %v962
    %1028 = vmatprep.subr.bf16.mxu0 %v965
    %1029 = vmatpush1.bf16.msra.mxu0 %v964
    %1030 = vmatprep.subr.bf16.mxu0 %v967
    %1031 = vmatpush1.bf16.msra.mxu0 %v966
    %1032 = vmatprep.subr.bf16.mxu0 %v969
    %1033 = vmatpush1.bf16.msra.mxu0 %v968
    %1034 = vmatprep.subr.bf16.mxu0 %v971
    %1035 = vmatpush1.bf16.msra.mxu0 %v970
    %1036 = vmatprep.subr.bf16.mxu0 %v973
    %1037 = vmatpush1.bf16.msra.mxu0 %v972
    %1038 = vmatprep.subr.bf16.mxu0 %v975
    %1039 = vmatpush1.bf16.msra.mxu0 %v974
    %1040 = vmatprep.subr.bf16.mxu0 %v977
    %1041 = vmatpush1.bf16.msra.mxu0 %v976
    %1042 = vmatprep.subr.bf16.mxu0 %v979
    %1043 = vmatpush1.bf16.msra.mxu0 %v978
    %1044 = vmatprep.subr.bf16.mxu0 %v981
    %1045 = vmatpush1.bf16.msra.mxu0 %v980
    %1046 = vmatprep.subr.bf16.mxu0 %v983
    %1047 = vmatpush1.bf16.msra.mxu0 %v982
    %1048 = vmatprep.mubr.bf16.mxu0 %v756
    %1049 = vmatmul.mubr.bf16.gmra.mrb[0].mxu0 %v755
    %v1050 = vpop.f32.mrb[0].mxu0
    %v1051 = vadd.f32 %v848, %v1050
    %v1052 = vpop.f32.mrb[0].mxu0
    %v1053 = vadd.f32 %v850, %v1052
    %v1054 = vpop.f32.mrb[0].mxu0
    %v1055 = vadd.f32 %v852, %v1054
    %v1056 = vpop.f32.mrb[0].mxu0
    %v1057 = vadd.f32 %v854, %v1056
    %1058 = vdwg.mxu0
    %v1059 = vld [vmem:[%s8] sm:$0x3]
    %v1061 = vlaneseq
    %v1062 = vshrl.u32 %v1061, 7
    %v1063 = vsub.s32 0, %v1062
    %v1064 = vrot.slane %v1059, %v1063
    %v1065 = vlaneseq
    %v1066 = vshrl.u32 %v1065, 7
    %v1067 = vsub.s32 1, %v1066
    %v1068 = vrot.slane %v1059, %v1067
    %v1071 = vadd.f32 %v1051, %v1064
    %v1072 = vadd.f32 %v1053, %v1068
    %v1073 = vadd.f32 %v1055, %v1064
    %v1074 = vadd.f32 %v1057, %v1068
    %v1075 = vmax.f32 %v1071, 0.0
    %v1076 = vmax.f32 %v1072, 0.0
    %v1077 = vmax.f32 %v1073, 0.0
    %v1078 = vmax.f32 %v1074, 0.0
    %v1079 = vpack.c.bf16 %v1077, %v1075
    %v1080 = vpack.c.bf16 %v1078, %v1076
    %v1081 = vld [vmem:[#allocation6] sm:$0xf]
    %v1082 = vld [vmem:[#allocation6 + $0x4] sm:$0xf]
    %v1083 = vld [vmem:[#allocation6 + $0x8] sm:$0xf]
    %v1084 = vld [vmem:[#allocation6 + $0xc] sm:$0xf]
    %v1085 = vld [vmem:[#allocation6 + $0x10] sm:$0xf]
    %v1086 = vld [vmem:[#allocation6 + $0x14] sm:$0xf]
    %v1087 = vld [vmem:[#allocation6 + $0x18] sm:$0xf]
    %v1088 = vld [vmem:[#allocation6 + $0x1c] sm:$0xf]
    %v1089 = vld [vmem:[#allocation6 + $0x20] sm:$0xf]
    %v1090 = vld [vmem:[#allocation6 + $0x24] sm:$0xf]
    %v1091 = vld [vmem:[#allocation6 + $0x28] sm:$0xf]
    %v1092 = vld [vmem:[#allocation6 + $0x2c] sm:$0xf]
    %v1093 = vld [vmem:[#allocation6 + $0x30] sm:$0xf]
    %v1094 = vld [vmem:[#allocation6 + $0x34] sm:$0xf]
    %v1095 = vld [vmem:[#allocation6 + $0x38] sm:$0xf]
    %v1096 = vld [vmem:[#allocation6 + $0x3c] sm:$0xf]
    %v1097 = vld [vmem:[#allocation6 + $0x40] sm:$0xf]
    %v1098 = vld [vmem:[#allocation6 + $0x44] sm:$0xf]
    %v1099 = vld [vmem:[#allocation6 + $0x48] sm:$0xf]
    %v1100 = vld [vmem:[#allocation6 + $0x4c] sm:$0xf]
    %v1101 = vld [vmem:[#allocation6 + $0x50] sm:$0xf]
    %v1102 = vld [vmem:[#allocation6 + $0x54] sm:$0xf]
    %v1103 = vld [vmem:[#allocation6 + $0x58] sm:$0xf]
    %v1104 = vld [vmem:[#allocation6 + $0x5c] sm:$0xf]
    %v1105 = vld [vmem:[#allocation6 + $0x60] sm:$0xf]
    %v1106 = vld [vmem:[#allocation6 + $0x64] sm:$0xf]
    %v1107 = vld [vmem:[#allocation6 + $0x68] sm:$0xf]
    %v1108 = vld [vmem:[#allocation6 + $0x6c] sm:$0xf]
    %v1109 = vld [vmem:[#allocation6 + $0x70] sm:$0xf]
    %v1110 = vld [vmem:[#allocation6 + $0x74] sm:$0xf]
    %v1111 = vld [vmem:[#allocation6 + $0x78] sm:$0xf]
    %v1112 = vld [vmem:[#allocation6 + $0x7c] sm:$0xf]
    %v1113 = vld [vmem:[%s10] sm:$0x1]
    %v1115 = vlaneseq
    %v1116 = vshrl.u32 %v1115, 7
    %v1117 = vsub.s32 0, %v1116
    %v1118 = vrot.slane %v1113, %v1117
    %v1152 = vunpack.c.l.b16 %v1081
    %v1153 = vunpack.c.l.b16 %v1082
    %v1154 = vunpack.c.l.b16 %v1083
    %v1155 = vunpack.c.l.b16 %v1084
    %v1156 = vunpack.c.l.b16 %v1085
    %v1157 = vunpack.c.l.b16 %v1086
    %v1158 = vunpack.c.l.b16 %v1087
    %v1159 = vunpack.c.l.b16 %v1088
    %v1160 = vunpack.c.l.b16 %v1089
    %v1161 = vunpack.c.l.b16 %v1090
    %v1162 = vunpack.c.l.b16 %v1091
    %v1163 = vunpack.c.l.b16 %v1092
    %v1164 = vunpack.c.l.b16 %v1093
    %v1165 = vunpack.c.l.b16 %v1094
    %v1166 = vunpack.c.l.b16 %v1095
    %v1167 = vunpack.c.l.b16 %v1096
    %v1168 = vunpack.c.l.b16 %v1097
    %v1169 = vunpack.c.l.b16 %v1098
    %v1170 = vunpack.c.l.b16 %v1099
    %v1171 = vunpack.c.l.b16 %v1100
    %v1172 = vunpack.c.l.b16 %v1101
    %v1173 = vunpack.c.l.b16 %v1102
    %v1174 = vunpack.c.l.b16 %v1103
    %v1175 = vunpack.c.l.b16 %v1104
    %v1176 = vunpack.c.l.b16 %v1105
    %v1177 = vunpack.c.l.b16 %v1106
    %v1178 = vunpack.c.l.b16 %v1107
    %v1179 = vunpack.c.l.b16 %v1108
    %v1180 = vunpack.c.l.b16 %v1109
    %v1181 = vunpack.c.l.b16 %v1110
    %v1182 = vunpack.c.l.b16 %v1111
    %v1183 = vunpack.c.l.b16 %v1112
    %v1184 = vpack.c.b16 %v1153, %v1152
    %v1185 = vpack.c.b16 %v1155, %v1154
    %v1186 = vpack.c.b16 %v1157, %v1156
    %v1187 = vpack.c.b16 %v1159, %v1158
    %v1188 = vpack.c.b16 %v1161, %v1160
    %v1189 = vpack.c.b16 %v1163, %v1162
    %v1190 = vpack.c.b16 %v1165, %v1164
    %v1191 = vpack.c.b16 %v1167, %v1166
    %v1192 = vpack.c.b16 %v1169, %v1168
    %v1193 = vpack.c.b16 %v1171, %v1170
    %v1194 = vpack.c.b16 %v1173, %v1172
    %v1195 = vpack.c.b16 %v1175, %v1174
    %v1196 = vpack.c.b16 %v1177, %v1176
    %v1197 = vpack.c.b16 %v1179, %v1178
    %v1198 = vpack.c.b16 %v1181, %v1180
    %v1199 = vpack.c.b16 %v1183, %v1182
    %1216 = vmatprep.subr.bf16.mxu0 0
    %1217 = vmatpush1.bf16.msra.mxu0 %v1184
    %1218 = vmatprep.subr.bf16.mxu0 0
    %1219 = vmatpush1.bf16.msra.mxu0 %v1185
    %1220 = vmatprep.subr.bf16.mxu0 0
    %1221 = vmatpush1.bf16.msra.mxu0 %v1186
    %1222 = vmatprep.subr.bf16.mxu0 0
    %1223 = vmatpush1.bf16.msra.mxu0 %v1187
    %1224 = vmatprep.subr.bf16.mxu0 0
    %1225 = vmatpush1.bf16.msra.mxu0 %v1188
    %1226 = vmatprep.subr.bf16.mxu0 0
    %1227 = vmatpush1.bf16.msra.mxu0 %v1189
    %1228 = vmatprep.subr.bf16.mxu0 0
    %1229 = vmatpush1.bf16.msra.mxu0 %v1190
    %1230 = vmatprep.subr.bf16.mxu0 0
    %1231 = vmatpush1.bf16.msra.mxu0 %v1191
    %1232 = vmatprep.subr.bf16.mxu0 0
    %1233 = vmatpush1.bf16.msra.mxu0 %v1192
    %1234 = vmatprep.subr.bf16.mxu0 0
    %1235 = vmatpush1.bf16.msra.mxu0 %v1193
    %1236 = vmatprep.subr.bf16.mxu0 0
    %1237 = vmatpush1.bf16.msra.mxu0 %v1194
    %1238 = vmatprep.subr.bf16.mxu0 0
    %1239 = vmatpush1.bf16.msra.mxu0 %v1195
    %1240 = vmatprep.subr.bf16.mxu0 0
    %1241 = vmatpush1.bf16.msra.mxu0 %v1196
    %1242 = vmatprep.subr.bf16.mxu0 0
    %1243 = vmatpush1.bf16.msra.mxu0 %v1197
    %1244 = vmatprep.subr.bf16.mxu0 0
    %1245 = vmatpush1.bf16.msra.mxu0 %v1198
    %1246 = vmatprep.subr.bf16.mxu0 0
    %1247 = vmatpush1.bf16.msra.mxu0 %v1199
    %1248 = vmatprep.mubr.bf16.mxu0 %v1080
    %1249 = vmatmul.mubr.bf16.gmra.mrb[0].mxu0 %v1079
    %v1250 = vpop.f32.mrb[0].mxu0
    %v1251 = vadd.f32 %v1118, %v1250
    %v1252 = vpop.f32.mrb[0].mxu0
    %v1253 = vpop.f32.mrb[0].mxu0
    %v1254 = vadd.f32 %v1118, %v1253
    %v1255 = vpop.f32.mrb[0].mxu0
    %1256 = vdwg.mxu0
    %v1257 = vmax.f32 %v1251, 0.0
    %v1258 = vmax.f32 %v1254, 0.0
    %v1259 = vpack.c.bf16 %v1258, %v1257
    %v1260 = vld [vmem:[#allocation7] sm:$0xf]
    %v1261 = vld [vmem:[#allocation7 + $0x4] sm:$0xf]
    %v1262 = vld [vmem:[#allocation7 + $0x8] sm:$0xf]
    %v1263 = vld [vmem:[#allocation7 + $0xc] sm:$0xf]
    %v1264 = vld [vmem:[#allocation7 + $0x10] sm:$0xf]
    %v1265 = vld [vmem:[#allocation7 + $0x14] sm:$0xf]
    %v1266 = vld [vmem:[#allocation7 + $0x18] sm:$0xf]
    %v1267 = vld [vmem:[#allocation7 + $0x1c] sm:$0xf]
    %v1268 = vld [vmem:[#allocation7 + $0x20] sm:$0xf]
    %v1269 = vld [vmem:[#allocation7 + $0x24] sm:$0xf]
    %v1270 = vld [vmem:[#allocation7 + $0x28] sm:$0xf]
    %v1271 = vld [vmem:[#allocation7 + $0x2c] sm:$0xf]
    %v1272 = vld [vmem:[#allocation7 + $0x30] sm:$0xf]
    %v1273 = vld [vmem:[#allocation7 + $0x34] sm:$0xf]
    %v1274 = vld [vmem:[#allocation7 + $0x38] sm:$0xf]
    %v1275 = vld [vmem:[#allocation7 + $0x3c] sm:$0xf]
    %v1276 = vld [vmem:[%s12] sm:$0x1]
    %v1278 = vlaneseq
    %v1279 = vshrl.u32 %v1278, 7
    %v1280 = vsub.s32 0, %v1279
    %v1281 = vrot.slane %v1276, %v1280
    %v1299 = vunpack.c.l.b16 %v1260
    %v1300 = vunpack.c.l.b16 %v1261
    %v1301 = vunpack.c.l.b16 %v1262
    %v1302 = vunpack.c.l.b16 %v1263
    %v1303 = vunpack.c.l.b16 %v1264
    %v1304 = vunpack.c.l.b16 %v1265
    %v1305 = vunpack.c.l.b16 %v1266
    %v1306 = vunpack.c.l.b16 %v1267
    %v1307 = vunpack.c.l.b16 %v1268
    %v1308 = vunpack.c.l.b16 %v1269
    %v1309 = vunpack.c.l.b16 %v1270
    %v1310 = vunpack.c.l.b16 %v1271
    %v1311 = vunpack.c.l.b16 %v1272
    %v1312 = vunpack.c.l.b16 %v1273
    %v1313 = vunpack.c.l.b16 %v1274
    %v1314 = vunpack.c.l.b16 %v1275
    %v1315 = vpack.c.b16 %v1300, %v1299
    %v1316 = vpack.c.b16 %v1302, %v1301
    %v1317 = vpack.c.b16 %v1304, %v1303
    %v1318 = vpack.c.b16 %v1306, %v1305
    %v1319 = vpack.c.b16 %v1308, %v1307
    %v1320 = vpack.c.b16 %v1310, %v1309
    %v1321 = vpack.c.b16 %v1312, %v1311
    %v1322 = vpack.c.b16 %v1314, %v1313
    %1331 = vmatprep.subr.bf16.mxu0 0
    %1332 = vmatpush1.bf16.msra.mxu0 %v1315
    %1333 = vmatprep.subr.bf16.mxu0 0
    %1334 = vmatpush1.bf16.msra.mxu0 %v1316
    %1335 = vmatprep.subr.bf16.mxu0 0
    %1336 = vmatpush1.bf16.msra.mxu0 %v1317
    %1337 = vmatprep.subr.bf16.mxu0 0
    %1338 = vmatpush1.bf16.msra.mxu0 %v1318
    %1339 = vmatprep.subr.bf16.mxu0 0
    %1340 = vmatpush1.bf16.msra.mxu0 %v1319
    %1341 = vmatprep.subr.bf16.mxu0 0
    %1342 = vmatpush1.bf16.msra.mxu0 %v1320
    %1343 = vmatprep.subr.bf16.mxu0 0
    %1344 = vmatpush1.bf16.msra.mxu0 %v1321
    %1345 = vmatprep.subr.bf16.mxu0 0
    %1346 = vmatpush1.bf16.msra.mxu0 %v1322
    %1347 = vmatprep.subr.bf16.mxu0 0
    %1348 = vmatpush1.bf16.msra.mxu0 0
    %1349 = vmatprep.subr.bf16.mxu0 0
    %1350 = vmatpush1.bf16.msra.mxu0 0
    %1351 = vmatprep.subr.bf16.mxu0 0
    %1352 = vmatpush1.bf16.msra.mxu0 0
    %1353 = vmatprep.subr.bf16.mxu0 0
    %1354 = vmatpush1.bf16.msra.mxu0 0
    %1355 = vmatprep.subr.bf16.mxu0 0
    %1356 = vmatpush1.bf16.msra.mxu0 0
    %1357 = vmatprep.subr.bf16.mxu0 0
    %1358 = vmatpush1.bf16.msra.mxu0 0
    %1359 = vmatprep.subr.bf16.mxu0 0
    %1360 = vmatpush1.bf16.msra.mxu0 0
    %1361 = vmatprep.subr.bf16.mxu0 0
    %1362 = vmatpush1.bf16.msra.mxu0 0
    %1363 = vmatprep.mubr.bf16.mxu0 0
    %1364 = vmatmul.mubr.bf16.gmra.mrb[0].mxu0 %v1259
    %v1365 = vpop.f32.mrb[0].mxu0
    %v1366 = vadd.f32 %v1281, %v1365
    %v1367 = vpop.f32.mrb[0].mxu0
    %v1368 = vpop.f32.mrb[0].mxu0
    %v1369 = vadd.f32 %v1281, %v1368
    %v1370 = vpop.f32.mrb[0].mxu0
    %1371 = vdwg.mxu0
    %v1372 = vpack.c.bf16 %v1369, %v1366
    %v1374 = vunpack.c.l.b16 %v1372
    %v1375 = vunpack.c.h.b16 %v1372
    %v1376 = vpack.c.b16 %v1374, %v1374
    %v1377 = vpack.c.b16 %v1375, %v1375
    %1380 = vst [vmem:[%s13] sm:$0xf] %v1376
    %1381 = vst [vmem:[%s13 + $0x4] sm:$0xf] %v1377
    // Predicated region
    $region70: #{cnn_forward.1} parent=1 // pred_check
      _
    $region71: #{cnn_forward.1} parent=1 // pred_check_branch
      %1383 = sbr.rel (0) target = $region73
    $region72: #{cnn_forward.1} parent=1 // pred_region
      _
    $region73: #{cnn_forward.1} parent=1 // pred_fallthru
      _
    // Predicated region
    $region74: #{cnn_forward.1} parent=1 // pred_check
      _
    $region75: #{cnn_forward.1} parent=1 // pred_check_branch
      %1385 = sbr.rel (0) target = $region77
    $region76: #{cnn_forward.1} parent=1 // pred_region
      _
    $region77: #{cnn_forward.1} parent=1 // pred_fallthru
      _
    %1386 = vsyncpa [#allocation3], 1
    %1387 = vsyncpa [#allocation5], 1
    %1388 = vsyncpa [#allocation8], 1

</llo_original>
